<compile_context>
chip_gen: v6e
topology: v6e:2x2x1
jax: 0.10.0
libtpu: 0.0.40
codegen_flags: <defaults>
</compile_context>

<pallas_src>
import functools

import numpy as np
import jax
import jax.numpy as jnp
from jax import lax
from jax.experimental import pallas as pl
from jax.experimental.pallas import tpu as pltpu

ALPHA = 0.7
BETA = 1.5
_LANE = 128
_STATIC_B = 4          # below this, per-batch loops are unrolled statically
_MAX_TILE_N = 16384    # diminishing returns / compile-time guard


def _round_up(x, m):
    return -(-x // m) * m


def _saloss_kernel(pts_ref, lbl_ref, emb_ref, out_ref,
                   sum_scr, count_scr, means_scr, intra_acc,
                   *, M, alpha, beta):
    p = pl.program_id(0)            # 0 = stats pass, 1 = loss pass
    t = pl.program_id(1)
    nt = pl.num_programs(1)

    B, K, TN = emb_ref.shape
    BC = lbl_ref.shape[0]           # B * C label channels
    nc = means_scr.shape[1]         # = M - 1 foreground classes

    # Per-class multiplicity weights for this N tile (lane-dense in N):
    #   w[c, n] = #{(b, ch) : true[b, n, ch] == c + 1}
    # One vectorized compare + sublane reduce (no serial BC-long VALU chain).
    lbl = lbl_ref[...].astype(jnp.int32)                             # (BC, TN)
    cls = 1 + lax.broadcasted_iota(jnp.int32, (nc, 1, 1), 0)         # classes 1..M-1
    w = jnp.sum((lbl[None, :, :] == cls).astype(jnp.float32), axis=1)  # (nc, TN)

    @pl.when((p == 0) & (t == 0))
    def _init():
        sum_scr[...] = jnp.zeros_like(sum_scr)
        count_scr[...] = jnp.zeros_like(count_scr)
        intra_acc[...] = jnp.zeros_like(intra_acc)

    @pl.when(p == 0)
    def _stats():
        count_scr[...] += jnp.sum(w, axis=1, keepdims=True)          # (nc, 1)
        # w holds small exact integers -> exact in bf16; MXU accumulates f32.
        w_mm = w.astype(emb_ref.dtype)

        def one_batch(b):
            # (nc, TN) x (K, TN)^T -> (nc, K): per-class embedding sums on MXU.
            sum_scr[b] = sum_scr[b] + lax.dot_general(
                w_mm, emb_ref[b], (((1,), (1,)), ((), ())),
                preferred_element_type=jnp.float32)

        if B < _STATIC_B:
            for b in range(B):
                one_batch(b)
        else:
            def fori_body(b, carry):
                one_batch(b)
                return carry
            lax.fori_loop(0, B, fori_body, 0)

    @pl.when((p == 1) & (t == 0))
    def _means():
        # Guard against empty classes (the PyTorch reference would NaN here);
        # counts are > 0 whenever labels really contain every value 1..M-1.
        inv = 1.0 / jnp.maximum(count_scr[...], 1.0)                 # (nc, 1)
        means_scr[...] = sum_scr[...] * inv[None]                    # (B, nc, K)

    @pl.when(p == 1)
    def _intra():
        inv_cnt = 1.0 / jnp.maximum(count_scr[...], 1.0)             # (nc, 1)
        w_scaled = w * inv_cnt                                       # (nc, TN)

        def one_batch(b, acc):
            emb_b = emb_ref[b]                                       # (K, TN)
            emb_f = emb_b.astype(jnp.float32)                        # f32 VPU math
            e2 = jnp.sum(emb_f * emb_f, axis=0, keepdims=True)       # (1, TN)
            pts_f = pts_ref[b].astype(jnp.float32)                   # (3, TN)
            g = jax.nn.sigmoid(jnp.sqrt(
                jnp.sum(pts_f * pts_f, axis=0, keepdims=True)))      # (1, TN)
            mean_b = means_scr[b]                                    # (nc, K) f32
            m2 = jnp.sum(mean_b * mean_b, axis=1, keepdims=True)     # (nc, 1)
            cross = jnp.dot(mean_b.astype(emb_b.dtype), emb_b,
                            preferred_element_type=jnp.float32)      # (nc, TN) MXU
            d2 = jnp.maximum(e2 + m2 - 2.0 * cross, 0.0)
            h = jnp.maximum(jnp.sqrt(d2) - alpha, 0.0)
            term = w_scaled * g * (h * h)                            # (nc, TN)
            return acc + jnp.sum(term, axis=0, keepdims=True)        # (1, TN)

        acc = jnp.zeros((1, TN), jnp.float32)
        if B < _STATIC_B:
            for b in range(B):
                acc = one_batch(b, acc)
        else:
            acc = lax.fori_loop(0, B, one_batch, acc)
        # Lane-vector accumulator: the cross-lane reduce happens once in _emit.
        intra_acc[...] += acc

    @pl.when((p == 1) & (t == nt - 1))
    def _emit():
        # Inter-class hinge in Gram form: d2 = m2_i + m2_j - 2 <m_i, m_j>.
        means = means_scr[...]                                       # (B, nc, K)
        m2 = jnp.sum(means * means, axis=2)                          # (B, nc)
        gram = jnp.einsum('bik,bjk->bij', means, means,
                          preferred_element_type=jnp.float32)        # (B, nc, nc)
        d2 = jnp.maximum(m2[:, :, None] + m2[:, None, :] - 2.0 * gram, 0.0)
        hin = jnp.maximum(beta - jnp.sqrt(d2), 0.0)
        ii = lax.broadcasted_iota(jnp.int32, (nc, nc), 0)
        jj = lax.broadcasted_iota(jnp.int32, (nc, nc), 1)
        off = (ii != jj).astype(jnp.float32)
        inter = jnp.sum(jnp.sum(hin * hin * off[None], axis=2),
                        axis=1, keepdims=True)                       # (B, 1)
        intra_total = jnp.sum(intra_acc[...]) * (1.0 / B)            # one reduce
        out_ref[...] = intra_total * (1.0 / M) + inter * (1.0 / (M * (M - 1)))


def saloss_pallas(points, true_labels, embedding, num_classes,
                  alpha=ALPHA, beta=BETA, stream_dtype=jnp.bfloat16,
                  max_tile_n=None):
    """num_classes = M = len(unique(true)); labels assumed to be {0,...,M-1}."""
    points = jnp.asarray(points, jnp.float32)
    embedding = jnp.asarray(embedding, jnp.float32)
    true_labels = jnp.asarray(true_labels, jnp.int32)

    B, N, _ = points.shape
    C = true_labels.shape[-1]
    K = embedding.shape[-1]
    M = int(num_classes)
    if M < 2:
        raise ValueError("SALoss needs at least one foreground class (M >= 2)")
    nc = M - 1

    stream_dtype = jnp.dtype(stream_dtype)
    lbl_dtype = jnp.dtype(jnp.int8) if M <= 127 else jnp.dtype(jnp.int32)

    # ---- generation-aware VMEM budget & N-tile selection ------------------
    try:
        vmem_cap = int(pltpu.get_tpu_info().vmem_capacity_bytes)
    except Exception:
        vmem_cap = 64 << 20                      # conservative (v7x-sized) fallback
    # ~56 MiB ceiling on 64-MiB parts (v7x), ~100 MiB on 128-MiB parts (v5e/v6e).
    budget = int(min(max(vmem_cap - (8 << 20), 32 << 20), 100 << 20))

    eb = stream_dtype.itemsize
    lb = lbl_dtype.itemsize
    stream_per_tn = B * 3 * eb + B * C * lb + B * K * eb        # one input buffer
    live_per_tn = 4 * (nc * B * C + 10 * nc + K + 10)           # in-kernel f32 temps
    fixed = 4 * (2 * B * nc * K + nc) + (4 << 20)               # scratch + slack
    tn_budget = max(int(0.8 * (budget - fixed)), 4 << 20)
    tn_cap = tn_budget // (2 * stream_per_tn + live_per_tn)     # double-buffered in
    tn_cap = max((min(int(tn_cap), _MAX_TILE_N) // _LANE) * _LANE, _LANE)
    if max_tile_n is not None:                                  # (testing override)
        tn_cap = min(tn_cap, max((int(max_tile_n) // _LANE) * _LANE, _LANE))

    n128 = _round_up(N, _LANE)
    if n128 <= tn_cap:
        TN = n128                                  # whole problem in a single tile
    elif tn_cap >= 512:
        TN = (tn_cap // 512) * 512                 # large tiles: amortize step cost
    else:
        TN = tn_cap
    N_pad = _round_up(N, TN)
    nt = N_pad // TN
    pad = N_pad - N

    # feature-last -> lane-dense-N layout + narrow streaming dtypes
    pts_t = jnp.transpose(points, (0, 2, 1)).astype(stream_dtype)      # (B, 3, N)
    emb_t = jnp.transpose(embedding, (0, 2, 1)).astype(stream_dtype)   # (B, K, N)
    lbl_t = jnp.transpose(true_labels, (0, 2, 1)).reshape(B * C, N)
    lbl_t = lbl_t.astype(lbl_dtype)
    if pad:
        # label pad value 0 == background -> zero weight, so padded positions
        # contribute nothing to counts, means or the loss.
        pts_t = jnp.pad(pts_t, ((0, 0), (0, 0), (0, pad)))
        emb_t = jnp.pad(emb_t, ((0, 0), (0, 0), (0, pad)))
        lbl_t = jnp.pad(lbl_t, ((0, 0), (0, pad)))

    kernel = functools.partial(_saloss_kernel, M=M,
                               alpha=float(alpha), beta=float(beta))

    out = pl.pallas_call(
        kernel,
        out_shape=jax.ShapeDtypeStruct((B, 1), jnp.float32),
        grid_spec=pltpu.PrefetchScalarGridSpec(
            num_scalar_prefetch=0,
            grid=(2, nt),                                  # (phase, n_tile)
            in_specs=[
                # points are only read in phase 1: freezing their block index
                # at 0 while p == 0 means Pallas never re-DMAs them during the
                # stats pass (saves ~B*3*N*eb bytes of HBM traffic).
                pl.BlockSpec((B, 3, TN), lambda p, t: (0, 0, t * p)),
                pl.BlockSpec((B * C, TN), lambda p, t: (0, t)),
                pl.BlockSpec((B, K, TN), lambda p, t: (0, 0, t)),
            ],
            out_specs=pl.BlockSpec((B, 1), lambda p, t: (0, 0)),
            scratch_shapes=[
                pltpu.VMEM((B, nc, K), jnp.float32),      # per-class embedding sums
                pltpu.VMEM((nc, 1), jnp.float32),         # per-class position counts
                pltpu.VMEM((B, nc, K), jnp.float32),      # per-class mean embeddings
                pltpu.VMEM((1, TN), jnp.float32),         # intra-loss lane accumulator
            ],
        ),
        compiler_params=pltpu.CompilerParams(
            dimension_semantics=("arbitrary", "arbitrary"),
            vmem_limit_bytes=budget),
    )(pts_t, lbl_t, emb_t)
    return out[:, 0]


def saloss_ref(points, true_labels, embedding, alpha=ALPHA, beta=BETA):
    """Pure numpy replica of the PyTorch forward (for verification)."""
    points = np.asarray(points, np.float64)
    embedding = np.asarray(embedding, np.float64)
    true_labels = np.asarray(true_labels)
    M = np.unique(true_labels).size
    B = points.shape[0]
    intra = 0.0
    inter = np.zeros((B,), np.float64)
    means = []
    for i in range(1, M):
        _, pos, _ = np.nonzero(true_labels == i)
        emb_i = embedding[:, pos]                         # (B, P, K)
        pt_i = points[:, pos]                             # (B, P, 3)
        g = 1.0 / (1.0 + np.exp(-np.sqrt((pt_i ** 2).sum(-1))))
        mean_i = embedding[:, pos].mean(axis=1)           # (B, K)
        means.append(mean_i)
        d = np.sqrt(((emb_i - mean_i[:, None, :]) ** 2).sum(-1))
        intra += (g * np.clip(d - alpha, 0.0, None) ** 2).mean()
    means = np.stack(means, axis=1)                       # (B, M-1, K)
    for i in range(1, M):
        for j in range(1, M):
            if i != j:
                d = np.sqrt(((means[:, i - 1] - means[:, j - 1]) ** 2).sum(-1))
                inter += np.clip(beta - d, 0.0, None) ** 2
    return intra / M + inter / (M * (M - 1))


if __name__ == "__main__":
    key = jax.random.PRNGKey(0)
    B, N, C, K = 2, 16, 1, 8
    num_classes = 4   # label values {0,1,2,3} -> M = 4
    kp, ke, kt = jax.random.split(key, 3)

    points = jax.random.normal(kp, (B, N, 3), jnp.float32)
    embedding = jax.random.normal(ke, (B, N, K), jnp.float32)
    true_labels = jax.random.randint(kt, (B, N, C), 0, num_classes, jnp.int32)
    # make sure every class value appears at least once (so no empty class)
    base = jnp.arange(num_classes, dtype=jnp.int32).reshape(1, num_classes, 1)
    true_labels = true_labels.at[:, :num_classes, :].set(
        jnp.broadcast_to(base, (B, num_classes, C)))

    ref = saloss_ref(points, true_labels, embedding)

    # f32 streaming path: tight check against the f64 numpy reference.
    out_f32 = jax.block_until_ready(
        saloss_pallas(points, true_labels, embedding, num_classes,
                      stream_dtype=jnp.float32))
    assert np.allclose(np.asarray(out_f32), ref, rtol=2e-3, atol=2e-4), \
        (np.asarray(out_f32), ref)

    # default fast path: bf16 embeddings/points + int8 labels (looser tolerance).
    out_bf16 = jax.block_until_ready(
        saloss_pallas(points, true_labels, embedding, num_classes))
    assert np.allclose(np.asarray(out_bf16), ref, rtol=5e-2, atol=5e-3), \
        (np.asarray(out_bf16), ref)

    # multi-tile path (nt > 1): exercises the two-phase accumulators and the
    # phase-gated points index_map with a forced small tile.
    N2 = 300
    kp2, ke2, kt2 = jax.random.split(jax.random.PRNGKey(1), 3)
    points2 = jax.random.normal(kp2, (B, N2, 3), jnp.float32)
    embedding2 = jax.random.normal(ke2, (B, N2, K), jnp.float32)
    true2 = jax.random.randint(kt2, (B, N2, C), 0, num_classes, jnp.int32)
    true2 = true2.at[:, :num_classes, :].set(
        jnp.broadcast_to(base, (B, num_classes, C)))
    ref2 = saloss_ref(points2, true2, embedding2)
    out2 = jax.block_until_ready(
        saloss_pallas(points2, true2, embedding2, num_classes,
                      stream_dtype=jnp.float32, max_tile_n=128))
    assert np.allclose(np.asarray(out2), ref2, rtol=2e-3, atol=2e-4), \
        (np.asarray(out2), ref2)

    print("KERNEL_OK")
</pallas_src>

<mosaic_0001>
module attributes {stable_mosaic.version = 11 : i64} {
  func.func @_saloss_kernel(%arg0: i32, %arg1: i32, %arg2: memref<2x3x128xf32, #tpu.memory_space<vmem>>, %arg3: memref<2x128xi8, #tpu.memory_space<vmem>>, %arg4: memref<2x8x128xf32, #tpu.memory_space<vmem>>, %arg5: memref<2x1xf32, #tpu.memory_space<vmem>>, %arg6: memref<2x3x8xf32, #tpu.memory_space<vmem>>, %arg7: memref<3x1xf32, #tpu.memory_space<vmem>>, %arg8: memref<2x3x8xf32, #tpu.memory_space<vmem>>, %arg9: memref<1x128xf32, #tpu.memory_space<vmem>>) attributes {dimension_semantics = [#tpu.dimension_semantics<arbitrary>, #tpu.dimension_semantics<arbitrary>], iteration_bounds = array<i64: 2, 1>, scalar_prefetch = 0 : i64, scratch_operands = 4 : i64, tpu.core_type = #tpu.core_type<tc>, window_params = [{transform_indices = @transform_0, window_bounds = array<i64: 2, 3, 128>}, {transform_indices = @transform_1, window_bounds = array<i64: 2, 128>}, {transform_indices = @transform_2, window_bounds = array<i64: 2, 8, 128>}, {pipeline_mode = #tpu.pipeline_mode<synchronous>, transform_indices = @transform_3, window_bounds = array<i64: 2, 1>}]} {
    %c0 = arith.constant 0 : index
    %c0_0 = arith.constant 0 : index
    %0 = vector.load %arg3[%c0, %c0_0] : memref<2x128xi8, #tpu.memory_space<vmem>>, vector<2x128xi8>
    %1 = arith.extsi %0 : vector<2x128xi8> to vector<2x128xi32>
    %2 = tpu.iota {dimensions = array<i32: 0>} : vector<3x1x1xi32>
    %c1_i32 = arith.constant 1 : i32
    %3 = vector.broadcast %c1_i32 : i32 to vector<3x1x1xi32>
    %4 = arith.addi %3, %2 : vector<3x1x1xi32>
    %5 = vector.shape_cast %1 : vector<2x128xi32> to vector<1x2x128xi32>
    %6 = vector.broadcast %5 : vector<1x2x128xi32> to vector<3x2x128xi32>
    %7 = vector.broadcast %4 : vector<3x1x1xi32> to vector<3x2x128xi32>
    %8 = arith.cmpi eq, %6, %7 : vector<3x2x128xi32>
    %9 = arith.extui %8 : vector<3x2x128xi1> to vector<3x2x128xi32>
    %10 = arith.sitofp %9 : vector<3x2x128xi32> to vector<3x2x128xf32>
    %cst = arith.constant dense<0.000000e+00> : vector<3x128xf32>
    %11 = vector.multi_reduction <add>, %10, %cst [1] : vector<3x2x128xf32> to vector<3x128xf32>
    %c0_i32 = arith.constant 0 : i32
    %12 = arith.cmpi eq, %arg0, %c0_i32 : i32
    %c0_i32_1 = arith.constant 0 : i32
    %13 = arith.cmpi eq, %arg1, %c0_i32_1 : i32
    %14 = arith.andi %12, %13 : i1
    %15 = arith.extui %14 : i1 to i32
    %c0_i32_2 = arith.constant 0 : i32
    %16 = arith.cmpi ne, %15, %c0_i32_2 : i32
    scf.if %16 {
      %cst_13 = arith.constant 0.000000e+00 : f32
      %33 = vector.broadcast %cst_13 : f32 to vector<2x3x8xf32>
      %c0_14 = arith.constant 0 : index
      %c0_15 = arith.constant 0 : index
      %c0_16 = arith.constant 0 : index
      %34 = vector.load %arg6[%c0_14, %c0_15, %c0_16] : memref<2x3x8xf32, #tpu.memory_space<vmem>>, vector<2x3x8xf32>
      tpu.vector_store %arg6[%c0_14, %c0_15, %c0_16], %33 {strides = array<i32>} : memref<2x3x8xf32, #tpu.memory_space<vmem>>, vector<2x3x8xf32>,
      %cst_17 = arith.constant 0.000000e+00 : f32
      %35 = vector.broadcast %cst_17 : f32 to vector<3x1xf32>
      %c0_18 = arith.constant 0 : index
      %c0_19 = arith.constant 0 : index
      %36 = vector.load %arg7[%c0_18, %c0_19] : memref<3x1xf32, #tpu.memory_space<vmem>>, vector<3x1xf32>
      tpu.vector_store %arg7[%c0_18, %c0_19], %35 {strides = array<i32>} : memref<3x1xf32, #tpu.memory_space<vmem>>, vector<3x1xf32>,
      %cst_20 = arith.constant 0.000000e+00 : f32
      %37 = vector.broadcast %cst_20 : f32 to vector<1x128xf32>
      %c0_21 = arith.constant 0 : index
      %c0_22 = arith.constant 0 : index
      %38 = vector.load %arg9[%c0_21, %c0_22] : memref<1x128xf32, #tpu.memory_space<vmem>>, vector<1x128xf32>
      tpu.vector_store %arg9[%c0_21, %c0_22], %37 {strides = array<i32>} : memref<1x128xf32, #tpu.memory_space<vmem>>, vector<1x128xf32>,
    } else {
    }
    %c0_i32_3 = arith.constant 0 : i32
    %17 = arith.cmpi eq, %arg0, %c0_i32_3 : i32
    %18 = arith.extui %17 : i1 to i32
    %c0_i32_4 = arith.constant 0 : i32
    %19 = arith.cmpi ne, %18, %c0_i32_4 : i32
    scf.if %19 {
      %c0_13 = arith.constant 0 : index
      %c0_14 = arith.constant 0 : index
      %33 = vector.load %arg7[%c0_13, %c0_14] : memref<3x1xf32, #tpu.memory_space<vmem>>, vector<3x1xf32>
      %cst_15 = arith.constant dense<0.000000e+00> : vector<3xf32>
      %34 = vector.multi_reduction <add>, %11, %cst_15 [1] : vector<3x128xf32> to vector<3xf32>
      %35 = vector.shape_cast %34 : vector<3xf32> to vector<3x1xf32>
      %36 = arith.addf %33, %35 : vector<3x1xf32>
      %c0_16 = arith.constant 0 : index
      %c0_17 = arith.constant 0 : index
      %37 = vector.load %arg7[%c0_16, %c0_17] : memref<3x1xf32, #tpu.memory_space<vmem>>, vector<3x1xf32>
      tpu.vector_store %arg7[%c0_16, %c0_17], %36 {strides = array<i32>} : memref<3x1xf32, #tpu.memory_space<vmem>>, vector<3x1xf32>,
      %c0_18 = arith.constant 0 : index
      %c0_19 = arith.constant 0 : index
      %c0_20 = arith.constant 0 : index
      %38 = vector.load %arg6[%c0_18, %c0_19, %c0_20] : memref<2x3x8xf32, #tpu.memory_space<vmem>>, vector<1x3x8xf32>
      %39 = vector.shape_cast %38 : vector<1x3x8xf32> to vector<3x8xf32>
      %c0_21 = arith.constant 0 : index
      %c0_22 = arith.constant 0 : index
      %c0_23 = arith.constant 0 : index
      %40 = vector.load %arg4[%c0_21, %c0_22, %c0_23] : memref<2x8x128xf32, #tpu.memory_space<vmem>>, vector<1x8x128xf32>
      %41 = vector.shape_cast %40 : vector<1x8x128xf32> to vector<8x128xf32>
      %cst_24 = arith.constant dense<0.000000e+00> : vector<3x8xf32>
      %42 = tpu.matmul %11, %41, %cst_24 {dimension_numbers = #tpu.dot_dimension_numbers<[1], [1], [0], [0], [0, 0, 1, 0], [], []>} : vector<3x128xf32>, vector<8x128xf32>, vector<3x8xf32> -> vector<3x8xf32>
      %43 = arith.addf %39, %42 : vector<3x8xf32>
      %c0_25 = arith.constant 0 : index
      %c0_26 = arith.constant 0 : index
      %c0_27 = arith.constant 0 : index
      %44 = vector.load %arg6[%c0_25, %c0_26, %c0_27] : memref<2x3x8xf32, #tpu.memory_space<vmem>>, vector<1x3x8xf32>
      %45 = vector.shape_cast %44 : vector<1x3x8xf32> to vector<3x8xf32>
      %46 = vector.shape_cast %43 : vector<3x8xf32> to vector<1x3x8xf32>
      tpu.vector_store %arg6[%c0_25, %c0_26, %c0_27], %46 {strides = array<i32>} : memref<2x3x8xf32, #tpu.memory_space<vmem>>, vector<1x3x8xf32>,
      %c1 = arith.constant 1 : index
      %c0_28 = arith.constant 0 : index
      %c0_29 = arith.constant 0 : index
      %47 = vector.load %arg6[%c1, %c0_28, %c0_29] : memref<2x3x8xf32, #tpu.memory_space<vmem>>, vector<1x3x8xf32>
      %48 = vector.shape_cast %47 : vector<1x3x8xf32> to vector<3x8xf32>
      %c1_30 = arith.constant 1 : index
      %c0_31 = arith.constant 0 : index
      %c0_32 = arith.constant 0 : index
      %49 = vector.load %arg4[%c1_30, %c0_31, %c0_32] : memref<2x8x128xf32, #tpu.memory_space<vmem>>, vector<1x8x128xf32>
      %50 = vector.shape_cast %49 : vector<1x8x128xf32> to vector<8x128xf32>
      %cst_33 = arith.constant dense<0.000000e+00> : vector<3x8xf32>
      %51 = tpu.matmul %11, %50, %cst_33 {dimension_numbers = #tpu.dot_dimension_numbers<[1], [1], [0], [0], [0, 0, 1, 0], [], []>} : vector<3x128xf32>, vector<8x128xf32>, vector<3x8xf32> -> vector<3x8xf32>
      %52 = arith.addf %48, %51 : vector<3x8xf32>
      %c1_34 = arith.constant 1 : index
      %c0_35 = arith.constant 0 : index
      %c0_36 = arith.constant 0 : index
      %53 = vector.load %arg6[%c1_34, %c0_35, %c0_36] : memref<2x3x8xf32, #tpu.memory_space<vmem>>, vector<1x3x8xf32>
      %54 = vector.shape_cast %53 : vector<1x3x8xf32> to vector<3x8xf32>
      %55 = vector.shape_cast %52 : vector<3x8xf32> to vector<1x3x8xf32>
      tpu.vector_store %arg6[%c1_34, %c0_35, %c0_36], %55 {strides = array<i32>} : memref<2x3x8xf32, #tpu.memory_space<vmem>>, vector<1x3x8xf32>,
    } else {
    }
    %c1_i32_5 = arith.constant 1 : i32
    %20 = arith.cmpi eq, %arg0, %c1_i32_5 : i32
    %c0_i32_6 = arith.constant 0 : i32
    %21 = arith.cmpi eq, %arg1, %c0_i32_6 : i32
    %22 = arith.andi %20, %21 : i1
    %23 = arith.extui %22 : i1 to i32
    %c0_i32_7 = arith.constant 0 : i32
    %24 = arith.cmpi ne, %23, %c0_i32_7 : i32
    scf.if %24 {
      %c0_13 = arith.constant 0 : index
      %c0_14 = arith.constant 0 : index
      %33 = vector.load %arg7[%c0_13, %c0_14] : memref<3x1xf32, #tpu.memory_space<vmem>>, vector<3x1xf32>
      %cst_15 = arith.constant 1.000000e+00 : f32
      %34 = vector.broadcast %cst_15 : f32 to vector<3x1xf32>
      %35 = arith.maximumf %33, %34 : vector<3x1xf32>
      %cst_16 = arith.constant 1.000000e+00 : f32
      %36 = vector.broadcast %cst_16 : f32 to vector<3x1xf32>
      %37 = arith.divf %36, %35 : vector<3x1xf32>
      %c0_17 = arith.constant 0 : index
      %c0_18 = arith.constant 0 : index
      %c0_19 = arith.constant 0 : index
      %38 = vector.load %arg6[%c0_17, %c0_18, %c0_19] : memref<2x3x8xf32, #tpu.memory_space<vmem>>, vector<2x3x8xf32>
      %39 = vector.shape_cast %37 : vector<3x1xf32> to vector<1x3x1xf32>
      %40 = vector.broadcast %39 : vector<1x3x1xf32> to vector<2x3x8xf32>
      %41 = arith.mulf %38, %40 : vector<2x3x8xf32>
      %c0_20 = arith.constant 0 : index
      %c0_21 = arith.constant 0 : index
      %c0_22 = arith.constant 0 : index
      %42 = vector.load %arg8[%c0_20, %c0_21, %c0_22] : memref<2x3x8xf32, #tpu.memory_space<vmem>>, vector<2x3x8xf32>
      tpu.vector_store %arg8[%c0_20, %c0_21, %c0_22], %41 {strides = array<i32>} : memref<2x3x8xf32, #tpu.memory_space<vmem>>, vector<2x3x8xf32>,
    } else {
    }
    %c1_i32_8 = arith.constant 1 : i32
    %25 = arith.cmpi eq, %arg0, %c1_i32_8 : i32
    %26 = arith.extui %25 : i1 to i32
    %c0_i32_9 = arith.constant 0 : i32
    %27 = arith.cmpi ne, %26, %c0_i32_9 : i32
    scf.if %27 {
      %c0_13 = arith.constant 0 : index
      %c0_14 = arith.constant 0 : index
      %33 = vector.load %arg7[%c0_13, %c0_14] : memref<3x1xf32, #tpu.memory_space<vmem>>, vector<3x1xf32>
      %cst_15 = arith.constant 1.000000e+00 : f32
      %34 = vector.broadcast %cst_15 : f32 to vector<3x1xf32>
      %35 = arith.maximumf %33, %34 : vector<3x1xf32>
      %cst_16 = arith.constant 1.000000e+00 : f32
      %36 = vector.broadcast %cst_16 : f32 to vector<3x1xf32>
      %37 = arith.divf %36, %35 : vector<3x1xf32>
      %38 = vector.broadcast %37 : vector<3x1xf32> to vector<3x128xf32>
      %39 = arith.mulf %11, %38 : vector<3x128xf32>
      %cst_17 = arith.constant 0.000000e+00 : f32
      %40 = vector.broadcast %cst_17 : f32 to vector<1x128xf32>
      %c0_18 = arith.constant 0 : index
      %c0_19 = arith.constant 0 : index
      %c0_20 = arith.constant 0 : index
      %41 = vector.load %arg4[%c0_18, %c0_19, %c0_20] : memref<2x8x128xf32, #tpu.memory_space<vmem>>, vector<1x8x128xf32>
      %42 = vector.shape_cast %41 : vector<1x8x128xf32> to vector<8x128xf32>
      %43 = arith.mulf %42, %42 : vector<8x128xf32>
      %cst_21 = arith.constant dense<0.000000e+00> : vector<128xf32>
      %44 = vector.multi_reduction <add>, %43, %cst_21 [0] : vector<8x128xf32> to vector<128xf32>
      %45 = vector.shape_cast %44 : vector<128xf32> to vector<1x128xf32>
      %c0_22 = arith.constant 0 : index
      %c0_23 = arith.constant 0 : index
      %c0_24 = arith.constant 0 : index
      %46 = vector.load %arg2[%c0_22, %c0_23, %c0_24] : memref<2x3x128xf32, #tpu.memory_space<vmem>>, vector<1x3x128xf32>
      %47 = vector.shape_cast %46 : vector<1x3x128xf32> to vector<3x128xf32>
      %48 = arith.mulf %47, %47 : vector<3x128xf32>
      %cst_25 = arith.constant dense<0.000000e+00> : vector<128xf32>
      %49 = vector.multi_reduction <add>, %48, %cst_25 [0] : vector<3x128xf32> to vector<128xf32>
      %50 = vector.shape_cast %49 : vector<128xf32> to vector<1x128xf32>
      %51 = math.sqrt %50 : vector<1x128xf32>
      %52 = arith.negf %51 : vector<1x128xf32>
      %53 = math.exp %52 : vector<1x128xf32>
      %cst_26 = arith.constant 1.000000e+00 : f32
      %54 = vector.broadcast %cst_26 : f32 to vector<1x128xf32>
      %55 = arith.addf %54, %53 : vector<1x128xf32>
      %56 = arith.divf %54, %55 : vector<1x128xf32>
      %c0_27 = arith.constant 0 : index
      %c0_28 = arith.constant 0 : index
      %c0_29 = arith.constant 0 : index
      %57 = vector.load %arg8[%c0_27, %c0_28, %c0_29] : memref<2x3x8xf32, #tpu.memory_space<vmem>>, vector<1x3x8xf32>
      %58 = vector.shape_cast %57 : vector<1x3x8xf32> to vector<3x8xf32>
      %59 = arith.mulf %58, %58 : vector<3x8xf32>
      %cst_30 = arith.constant dense<0.000000e+00> : vector<3xf32>
      %60 = vector.multi_reduction <add>, %59, %cst_30 [1] : vector<3x8xf32> to vector<3xf32>
      %61 = vector.shape_cast %60 : vector<3xf32> to vector<3x1xf32>
      %cst_31 = arith.constant dense<0.000000e+00> : vector<3x128xf32>
      %62 = tpu.matmul %58, %42, %cst_31 {dimension_numbers = #tpu.dot_dimension_numbers<[1], [0], [0], [1], [0, 0, 1, 1], [], []>} : vector<3x8xf32>, vector<8x128xf32>, vector<3x128xf32> -> vector<3x128xf32>
      %63 = vector.broadcast %45 : vector<1x128xf32> to vector<3x128xf32>
      %64 = vector.broadcast %61 : vector<3x1xf32> to vector<3x128xf32>
      %65 = arith.addf %63, %64 : vector<3x128xf32>
      %cst_32 = arith.constant 2.000000e+00 : f32
      %66 = vector.broadcast %cst_32 : f32 to vector<3x128xf32>
      %67 = arith.mulf %66, %62 : vector<3x128xf32>
      %68 = arith.subf %65, %67 : vector<3x128xf32>
      %cst_33 = arith.constant 0.000000e+00 : f32
      %69 = vector.broadcast %cst_33 : f32 to vector<3x128xf32>
      %70 = arith.maximumf %68, %69 : vector<3x128xf32>
      %71 = math.sqrt %70 : vector<3x128xf32>
      %cst_34 = arith.constant 0.699999988 : f32
      %72 = vector.broadcast %cst_34 : f32 to vector<3x128xf32>
      %73 = arith.subf %71, %72 : vector<3x128xf32>
      %cst_35 = arith.constant 0.000000e+00 : f32
      %74 = vector.broadcast %cst_35 : f32 to vector<3x128xf32>
      %75 = arith.maximumf %73, %74 : vector<3x128xf32>
      %76 = vector.broadcast %56 : vector<1x128xf32> to vector<3x128xf32>
      %77 = arith.mulf %39, %76 : vector<3x128xf32>
      %78 = arith.mulf %75, %75 : vector<3x128xf32>
      %79 = arith.mulf %77, %78 : vector<3x128xf32>
      %cst_36 = arith.constant dense<0.000000e+00> : vector<128xf32>
      %80 = vector.multi_reduction <add>, %79, %cst_36 [0] : vector<3x128xf32> to vector<128xf32>
      %81 = vector.shape_cast %80 : vector<128xf32> to vector<1x128xf32>
      %82 = arith.addf %40, %81 : vector<1x128xf32>
      %c1 = arith.constant 1 : index
      %c0_37 = arith.constant 0 : index
      %c0_38 = arith.constant 0 : index
      %83 = vector.load %arg4[%c1, %c0_37, %c0_38] : memref<2x8x128xf32, #tpu.memory_space<vmem>>, vector<1x8x128xf32>
      %84 = vector.shape_cast %83 : vector<1x8x128xf32> to vector<8x128xf32>
      %85 = arith.mulf %84, %84 : vector<8x128xf32>
      %cst_39 = arith.constant dense<0.000000e+00> : vector<128xf32>
      %86 = vector.multi_reduction <add>, %85, %cst_39 [0] : vector<8x128xf32> to vector<128xf32>
      %87 = vector.shape_cast %86 : vector<128xf32> to vector<1x128xf32>
      %c1_40 = arith.constant 1 : index
      %c0_41 = arith.constant 0 : index
      %c0_42 = arith.constant 0 : index
      %88 = vector.load %arg2[%c1_40, %c0_41, %c0_42] : memref<2x3x128xf32, #tpu.memory_space<vmem>>, vector<1x3x128xf32>
      %89 = vector.shape_cast %88 : vector<1x3x128xf32> to vector<3x128xf32>
      %90 = arith.mulf %89, %89 : vector<3x128xf32>
      %cst_43 = arith.constant dense<0.000000e+00> : vector<128xf32>
      %91 = vector.multi_reduction <add>, %90, %cst_43 [0] : vector<3x128xf32> to vector<128xf32>
      %92 = vector.shape_cast %91 : vector<128xf32> to vector<1x128xf32>
      %93 = math.sqrt %92 : vector<1x128xf32>
      %94 = arith.negf %93 : vector<1x128xf32>
      %95 = math.exp %94 : vector<1x128xf32>
      %cst_44 = arith.constant 1.000000e+00 : f32
      %96 = vector.broadcast %cst_44 : f32 to vector<1x128xf32>
      %97 = arith.addf %96, %95 : vector<1x128xf32>
      %98 = arith.divf %96, %97 : vector<1x128xf32>
      %c1_45 = arith.constant 1 : index
      %c0_46 = arith.constant 0 : index
      %c0_47 = arith.constant 0 : index
      %99 = vector.load %arg8[%c1_45, %c0_46, %c0_47] : memref<2x3x8xf32, #tpu.memory_space<vmem>>, vector<1x3x8xf32>
      %100 = vector.shape_cast %99 : vector<1x3x8xf32> to vector<3x8xf32>
      %101 = arith.mulf %100, %100 : vector<3x8xf32>
      %cst_48 = arith.constant dense<0.000000e+00> : vector<3xf32>
      %102 = vector.multi_reduction <add>, %101, %cst_48 [1] : vector<3x8xf32> to vector<3xf32>
      %103 = vector.shape_cast %102 : vector<3xf32> to vector<3x1xf32>
      %cst_49 = arith.constant dense<0.000000e+00> : vector<3x128xf32>
      %104 = tpu.matmul %100, %84, %cst_49 {dimension_numbers = #tpu.dot_dimension_numbers<[1], [0], [0], [1], [0, 0, 1, 1], [], []>} : vector<3x8xf32>, vector<8x128xf32>, vector<3x128xf32> -> vector<3x128xf32>
      %105 = vector.broadcast %87 : vector<1x128xf32> to vector<3x128xf32>
      %106 = vector.broadcast %103 : vector<3x1xf32> to vector<3x128xf32>
      %107 = arith.addf %105, %106 : vector<3x128xf32>
      %cst_50 = arith.constant 2.000000e+00 : f32
      %108 = vector.broadcast %cst_50 : f32 to vector<3x128xf32>
      %109 = arith.mulf %108, %104 : vector<3x128xf32>
      %110 = arith.subf %107, %109 : vector<3x128xf32>
      %cst_51 = arith.constant 0.000000e+00 : f32
      %111 = vector.broadcast %cst_51 : f32 to vector<3x128xf32>
      %112 = arith.maximumf %110, %111 : vector<3x128xf32>
      %113 = math.sqrt %112 : vector<3x128xf32>
      %cst_52 = arith.constant 0.699999988 : f32
      %114 = vector.broadcast %cst_52 : f32 to vector<3x128xf32>
      %115 = arith.subf %113, %114 : vector<3x128xf32>
      %cst_53 = arith.constant 0.000000e+00 : f32
      %116 = vector.broadcast %cst_53 : f32 to vector<3x128xf32>
      %117 = arith.maximumf %115, %116 : vector<3x128xf32>
      %118 = vector.broadcast %98 : vector<1x128xf32> to vector<3x128xf32>
      %119 = arith.mulf %39, %118 : vector<3x128xf32>
      %120 = arith.mulf %117, %117 : vector<3x128xf32>
      %121 = arith.mulf %119, %120 : vector<3x128xf32>
      %cst_54 = arith.constant dense<0.000000e+00> : vector<128xf32>
      %122 = vector.multi_reduction <add>, %121, %cst_54 [0] : vector<3x128xf32> to vector<128xf32>
      %123 = vector.shape_cast %122 : vector<128xf32> to vector<1x128xf32>
      %124 = arith.addf %82, %123 : vector<1x128xf32>
      %c0_55 = arith.constant 0 : index
      %c0_56 = arith.constant 0 : index
      %125 = vector.load %arg9[%c0_55, %c0_56] : memref<1x128xf32, #tpu.memory_space<vmem>>, vector<1x128xf32>
      %126 = arith.addf %125, %124 : vector<1x128xf32>
      %c0_57 = arith.constant 0 : index
      %c0_58 = arith.constant 0 : index
      %127 = vector.load %arg9[%c0_57, %c0_58] : memref<1x128xf32, #tpu.memory_space<vmem>>, vector<1x128xf32>
      tpu.vector_store %arg9[%c0_57, %c0_58], %126 {strides = array<i32>} : memref<1x128xf32, #tpu.memory_space<vmem>>, vector<1x128xf32>,
    } else {
    }
    %c1_i32_10 = arith.constant 1 : i32
    %28 = arith.cmpi eq, %arg0, %c1_i32_10 : i32
    %c0_i32_11 = arith.constant 0 : i32
    %29 = arith.cmpi eq, %arg1, %c0_i32_11 : i32
    %30 = arith.andi %28, %29 : i1
    %31 = arith.extui %30 : i1 to i32
    %c0_i32_12 = arith.constant 0 : i32
    %32 = arith.cmpi ne, %31, %c0_i32_12 : i32
    scf.if %32 {
      %c0_13 = arith.constant 0 : index
      %c0_14 = arith.constant 0 : index
      %c0_15 = arith.constant 0 : index
      %33 = vector.load %arg8[%c0_13, %c0_14, %c0_15] : memref<2x3x8xf32, #tpu.memory_space<vmem>>, vector<2x3x8xf32>
      %34 = arith.mulf %33, %33 : vector<2x3x8xf32>
      %cst_16 = arith.constant dense<0.000000e+00> : vector<2x3xf32>
      %35 = vector.multi_reduction <add>, %34, %cst_16 [2] : vector<2x3x8xf32> to vector<2x3xf32>
      "tpu.trace_start"() <{level = 10 : i32, message = "bik,bjk->bij"}> : () -> ()
      %cst_17 = arith.constant dense<0.000000e+00> : vector<2x3x3xf32>
      %36 = tpu.matmul %33, %33, %cst_17 {dimension_numbers = #tpu.dot_dimension_numbers<[2], [2], [1], [1], [0, 0, 0, 1, 1, 1], [0], [0]>} : vector<2x3x8xf32>, vector<2x3x8xf32>, vector<2x3x3xf32> -> vector<2x3x3xf32>
      "tpu.trace_stop"() : () -> ()
      %37 = vector.shape_cast %35 : vector<2x3xf32> to vector<2x3x1xf32>
      %38 = vector.shape_cast %35 : vector<2x3xf32> to vector<2x1x3xf32>
      %39 = vector.broadcast %37 : vector<2x3x1xf32> to vector<2x3x3xf32>
      %40 = vector.broadcast %38 : vector<2x1x3xf32> to vector<2x3x3xf32>
      %41 = arith.addf %39, %40 : vector<2x3x3xf32>
      %cst_18 = arith.constant 2.000000e+00 : f32
      %42 = vector.broadcast %cst_18 : f32 to vector<2x3x3xf32>
      %43 = arith.mulf %42, %36 : vector<2x3x3xf32>
      %44 = arith.subf %41, %43 : vector<2x3x3xf32>
      %cst_19 = arith.constant 0.000000e+00 : f32
      %45 = vector.broadcast %cst_19 : f32 to vector<2x3x3xf32>
      %46 = arith.maximumf %44, %45 : vector<2x3x3xf32>
      %47 = math.sqrt %46 : vector<2x3x3xf32>
      %cst_20 = arith.constant 1.500000e+00 : f32
      %48 = vector.broadcast %cst_20 : f32 to vector<2x3x3xf32>
      %49 = arith.subf %48, %47 : vector<2x3x3xf32>
      %cst_21 = arith.constant 0.000000e+00 : f32
      %50 = vector.broadcast %cst_21 : f32 to vector<2x3x3xf32>
      %51 = arith.maximumf %49, %50 : vector<2x3x3xf32>
      %52 = tpu.iota {dimensions = array<i32: 0>} : vector<3x3xi32>
      %53 = tpu.iota {dimensions = array<i32: 1>} : vector<3x3xi32>
      %54 = arith.cmpi ne, %52, %53 : vector<3x3xi32>
      %55 = arith.extui %54 : vector<3x3xi1> to vector<3x3xi32>
      %56 = arith.sitofp %55 : vector<3x3xi32> to vector<3x3xf32>
      %57 = arith.mulf %51, %51 : vector<2x3x3xf32>
      %58 = vector.shape_cast %56 : vector<3x3xf32> to vector<1x3x3xf32>
      %59 = vector.broadcast %58 : vector<1x3x3xf32> to vector<2x3x3xf32>
      %60 = arith.mulf %57, %59 : vector<2x3x3xf32>
      %cst_22 = arith.constant dense<0.000000e+00> : vector<2x3xf32>
      %61 = vector.multi_reduction <add>, %60, %cst_22 [2] : vector<2x3x3xf32> to vector<2x3xf32>
      %cst_23 = arith.constant dense<0.000000e+00> : vector<2xf32>
      %62 = vector.multi_reduction <add>, %61, %cst_23 [1] : vector<2x3xf32> to vector<2xf32>
      %63 = vector.shape_cast %62 : vector<2xf32> to vector<2x1xf32>
      %c0_24 = arith.constant 0 : index
      %c0_25 = arith.constant 0 : index
      %64 = vector.load %arg9[%c0_24, %c0_25] : memref<1x128xf32, #tpu.memory_space<vmem>>, vector<1x128xf32>
      %65 = vector.shape_cast %64 : vector<1x128xf32> to vector<1x1x128xf32>
      %cst_26 = arith.constant dense<0.000000e+00> : vector<1xf32>
      %66 = vector.multi_reduction <add>, %65, %cst_26 [1, 2] : vector<1x1x128xf32> to vector<1xf32>
      %67 = vector.shape_cast %66 : vector<1xf32> to vector<1x1x1xf32>
      %68 = vector.extract %67[0, 0, 0] : f32 from vector<1x1x1xf32>
      %cst_27 = arith.constant 5.000000e-01 : f32
      %69 = arith.mulf %68, %cst_27 : f32
      %cst_28 = arith.constant 2.500000e-01 : f32
      %70 = arith.mulf %69, %cst_28 : f32
      %cst_29 = arith.constant 0.0833333358 : f32
      %71 = vector.broadcast %cst_29 : f32 to vector<2x1xf32>
      %72 = arith.mulf %63, %71 : vector<2x1xf32>
      %73 = vector.broadcast %70 : f32 to vector<2x1xf32>
      %74 = arith.addf %73, %72 : vector<2x1xf32>
      %c0_30 = arith.constant 0 : index
      %c0_31 = arith.constant 0 : index
      %75 = vector.load %arg5[%c0_30, %c0_31] : memref<2x1xf32, #tpu.memory_space<vmem>>, vector<2x1xf32>
      tpu.vector_store %arg5[%c0_30, %c0_31], %74 {strides = array<i32>} : memref<2x1xf32, #tpu.memory_space<vmem>>, vector<2x1xf32>,
    } else {
    }
    return
  }
  func.func @transform_0(%arg0: i32, %arg1: i32) -> (i32, i32, i32) {
    %0 = arith.muli %arg1, %arg0 : i32
    %c0_i32 = arith.constant 0 : i32
    %c0_i32_0 = arith.constant 0 : i32
    %c0_i32_1 = arith.constant 0 : i32
    return %c0_i32, %c0_i32_0, %0 : i32, i32, i32
  }
  func.func @transform_1(%arg0: i32, %arg1: i32) -> (i32, i32) {
    %c0_i32 = arith.constant 0 : i32
    %c0_i32_0 = arith.constant 0 : i32
    return %c0_i32, %arg1 : i32, i32
  }
  func.func @transform_2(%arg0: i32, %arg1: i32) -> (i32, i32, i32) {
    %c0_i32 = arith.constant 0 : i32
    %c0_i32_0 = arith.constant 0 : i32
    %c0_i32_1 = arith.constant 0 : i32
    return %c0_i32, %c0_i32_0, %arg1 : i32, i32, i32
  }
  func.func @transform_3(%arg0: i32, %arg1: i32) -> (i32, i32) {
    %c0_i32 = arith.constant 0 : i32
    %c0_i32_0 = arith.constant 0 : i32
    %c0_i32_1 = arith.constant 0 : i32
    return %c0_i32, %c0_i32_0 : i32, i32
  }
}

</mosaic_0001>

<llo_original>
// kernel: tpu_custom_call.1
$region0: #{tpu_custom_call.1}
  #allocation0 [shape = 'u32[]', space=smem, size = 0x4, offset = 0x4, fixed_abs, tag = 'smem constant byte address 0x4 - core index']
  #allocation1 [shape = 'u32[144,128]{1,0:T(1,128)}', space=vmem, size = 0x12000, scoped, tag = 'internal scratch']
  #allocation2 [shape = 'f32[2,3,8]{2,1,0:T(4,128)}', space=vmem, size = 0x1000, scoped, tag = 'scratch operand']
  #allocation3 [shape = 'f32[3,1]{1,0:T(4,128)}', space=vmem, size = 0x800, scoped, tag = 'scratch operand']
  #allocation4 [shape = 'f32[2,3,8]{2,1,0:T(4,128)}', space=vmem, size = 0x1000, scoped, tag = 'scratch operand']
  #allocation5 [shape = 'f32[1,128]{1,0:T(1,128)}', space=vmem, size = 0x200, scoped, tag = 'scratch operand']
  %s0 = inlined_call_operand.vmem [shape: f32[2,3,128], index: 0, kind: input, shape index: {}]
  %s1 = inlined_call_operand.vmem [shape: s8[2,128], index: 1, kind: input, shape index: {}]
  %s2 = inlined_call_operand.vmem [shape: f32[2,8,128], index: 2, kind: input, shape index: {}]
  %s3 = inlined_call_operand.vmem [shape: f32[2,1], index: 3, kind: output, shape index: {}]
  %s4 = sld [smem:[#allocation0]]
  $region65: #{tpu_custom_call.1} parent=0
    _
  %s6 = ssub.s32 1, %s4
  %s7 = scalar_select 0, %s6, %s4
  loop: start=0, step=1, limit=4
  $region2: #{tpu_custom_call.1} parent=0 // loop_pre_header
    _
  $region3: #{tpu_custom_call.1} parent=0 // loop_header
    %s9 = sphi 0, %s13
    %p10 = scmp.ge.s32.totalorder %s9, 4
    %s16 = sphi 0, %s28
    %s17 = sphi 0, %s24
    %s18 = sphi 0, %s16
    %s19 = sphi 0, %s17
    %s20 = sphi 0, %s18
    %s21 = sphi 0, %s19
    %s33 = sphi 0, %s35
    %s36 = sphi 0, %s33
    %s37 = sphi 0, %s36
    %s53 = sphi 0, %s37
    %s59 = sphi 0, %s61
    %s62 = sphi 0, %s59
    %s63 = sphi 0, %s62
    %s79 = sphi 0, %s63
    %s85 = sphi 0, %s87
    %s88 = sphi 0, %s85
    %s89 = sphi 0, %s88
    %s105 = sphi 0, %s89
    %s109 = sphi 0, %s109
    %s111 = sphi 0, %s109
    %s112 = sphi 0, %s111
    %s126 = sphi 0, %s112
  $region4: #{tpu_custom_call.1} parent=0 // loop_header_branch
    %12 = sbr.rel (%p10) target = $region8
  $region5: #{tpu_custom_call.1} parent=0 // loop_body
    %s14 = ssub.s32 %s9, 1
    %s15 = ssub.s32 %s9, 2
    %s22 = sadd.s32 1, %s17
    %p23 = scmp.ge.s32.totalorder %s22, 1
    %s24 = scalar_select %p23, 0, %s22
    %s25 = sadd.s32 1, %s16
    %s26 = scalar_select %p23, %s25, %s16
    %p27 = scmp.ge.s32.totalorder %s26, 2
    %s28 = scalar_select %p27, 0, %s26
    %s29 = smul.u32 %s17, %s16
    %s30 = smul.u32 %s24, %s28
    %s31 = ssub.s32 %s29, %s30
    %p32 = scmp.eq.s32.totalorder %s31, 0
    %s34 = sadd.s32 %s33, 1
    %s35 = scalar_select %p32, %s33, %s34
    %p38 = pneg %p32
    %p39 = scmp.eq.s32.totalorder %s9, 1
    %p40 = por %p38, %p39
    %p41 = scmp.ne.s32.totalorder %s33, %s36
    %p42 = scmp.eq.s32.totalorder %s9, 0
    %p43 = por %p41, %p42
    %p44 = scmp.ne.s32.totalorder %s33, %s36
    %p45 = scmp.eq.s32.totalorder %s14, 1
    %p46 = por %p44, %p45
    %p47 = scmp.ne.s32.totalorder %s36, %s37
    %p48 = scmp.eq.s32.totalorder %s14, 0
    %p49 = por %p47, %p48
    %p50 = scmp.ne.s32.totalorder %s36, %s37
    %p51 = scmp.eq.s32.totalorder %s15, 1
    %p52 = por %p50, %p51
    %p54 = scmp.ne.s32.totalorder %s37, %s53
    %p55 = scmp.eq.s32.totalorder %s15, 0
    %p56 = por %p54, %p55
    %s57 = ssub.s32 %s17, %s24
    %p58 = scmp.eq.s32.totalorder %s57, 0
    %s60 = sadd.s32 %s59, 1
    %s61 = scalar_select %p58, %s59, %s60
    %p64 = pneg %p58
    %p65 = scmp.eq.s32.totalorder %s9, 1
    %p66 = por %p64, %p65
    %p67 = scmp.ne.s32.totalorder %s59, %s62
    %p68 = scmp.eq.s32.totalorder %s9, 0
    %p69 = por %p67, %p68
    %p70 = scmp.ne.s32.totalorder %s59, %s62
    %p71 = scmp.eq.s32.totalorder %s14, 1
    %p72 = por %p70, %p71
    %p73 = scmp.ne.s32.totalorder %s62, %s63
    %p74 = scmp.eq.s32.totalorder %s14, 0
    %p75 = por %p73, %p74
    %p76 = scmp.ne.s32.totalorder %s62, %s63
    %p77 = scmp.eq.s32.totalorder %s15, 1
    %p78 = por %p76, %p77
    %p80 = scmp.ne.s32.totalorder %s63, %s79
    %p81 = scmp.eq.s32.totalorder %s15, 0
    %p82 = por %p80, %p81
    %s83 = ssub.s32 %s17, %s24
    %p84 = scmp.eq.s32.totalorder %s83, 0
    %s86 = sadd.s32 %s85, 1
    %s87 = scalar_select %p84, %s85, %s86
    %p90 = pneg %p84
    %p91 = scmp.eq.s32.totalorder %s9, 1
    %p92 = por %p90, %p91
    %p93 = scmp.ne.s32.totalorder %s85, %s88
    %p94 = scmp.eq.s32.totalorder %s9, 0
    %p95 = por %p93, %p94
    %p96 = scmp.ne.s32.totalorder %s85, %s88
    %p97 = scmp.eq.s32.totalorder %s14, 1
    %p98 = por %p96, %p97
    %p99 = scmp.ne.s32.totalorder %s88, %s89
    %p100 = scmp.eq.s32.totalorder %s14, 0
    %p101 = por %p99, %p100
    %p102 = scmp.ne.s32.totalorder %s88, %s89
    %p103 = scmp.eq.s32.totalorder %s15, 1
    %p104 = por %p102, %p103
    %p106 = scmp.ne.s32.totalorder %s89, %s105
    %p107 = scmp.eq.s32.totalorder %s15, 0
    %p108 = por %p106, %p107
    %s110 = sadd.s32 %s109, 1
    %p113 = scmp.eq.s32.totalorder %s9, 1
    %p114 = scmp.ne.s32.totalorder %s109, %s111
    %p115 = scmp.eq.s32.totalorder %s9, 0
    %p116 = por %p114, %p115
    %p117 = scmp.ne.s32.totalorder %s109, %s111
    %p118 = scmp.eq.s32.totalorder %s14, 1
    %p119 = por %p117, %p118
    %p120 = scmp.ne.s32.totalorder %s111, %s112
    %p121 = scmp.eq.s32.totalorder %s14, 0
    %p122 = por %p120, %p121
    %p123 = scmp.ne.s32.totalorder %s111, %s112
    %p124 = scmp.eq.s32.totalorder %s15, 1
    %p125 = por %p123, %p124
    %p127 = scmp.ne.s32.totalorder %s112, %s126
    %p128 = scmp.eq.s32.totalorder %s15, 0
    %p129 = por %p127, %p128
    %p130 = scmp.le.s32.totalorder 1, %s9
    %p131 = scmp.lt.s32.totalorder %s9, 3
    %p132 = pnand %p130, %p131
    %p133 = pneg %p132
    // Predicated region
    $region9: #{tpu_custom_call.1} parent=5 // pred_check
      _
    $region10: #{tpu_custom_call.1} parent=5 // pred_check_branch
      %135 = sbr.rel (%p132) target = $region12
    $region11: #{tpu_custom_call.1} parent=5 // pred_region
      %s136 = ssub.s32 %s9, 1
      // Predicated region
      $region13: #{tpu_custom_call.1} parent=11 // pred_check
        %p137 = pneg %p75
      $region14: #{tpu_custom_call.1} parent=11 // pred_check_branch
        %139 = sbr.rel (%p137) target = $region16
      $region15: #{tpu_custom_call.1} parent=11 // pred_region
        %p140 = scmp.lt.s32.totalorder %s19, 0
        %s141 = scalar_select %p140, %s19, 0
        %s142 = scalar_lea.vmem %s1, %s141
      $region16: #{tpu_custom_call.1} parent=11 // pred_fallthru
        _
      // Predicated region
      $region17: #{tpu_custom_call.1} parent=11 // pred_check
        %p143 = pneg %p101
      $region18: #{tpu_custom_call.1} parent=11 // pred_check_branch
        %145 = sbr.rel (%p143) target = $region20
      $region19: #{tpu_custom_call.1} parent=11 // pred_region
        %p146 = scmp.lt.s32.totalorder %s19, 0
        %s147 = scalar_select %p146, %s19, 0
        %s148 = smul.addr %s147, 8
        %s149 = scalar_lea.vmem %s2, %s148
      $region20: #{tpu_custom_call.1} parent=11 // pred_fallthru
        _
    $region12: #{tpu_custom_call.1} parent=5 // pred_fallthru
      _
    %p150 = scmp.lt.s32.totalorder %s9, 2
    // Predicated region
    $region21: #{tpu_custom_call.1} parent=5 // pred_check
      %p151 = pneg %p150
    $region22: #{tpu_custom_call.1} parent=5 // pred_check_branch
      %153 = sbr.rel (%p151) target = $region24
    $region23: #{tpu_custom_call.1} parent=5 // pred_region
      // Predicated region
      $region25: #{tpu_custom_call.1} parent=23 // pred_check
        %p154 = pneg %p43
      $region26: #{tpu_custom_call.1} parent=23 // pred_check_branch
        %156 = sbr.rel (%p154) target = $region28
      $region27: #{tpu_custom_call.1} parent=23 // pred_region
        %s157 = smul.u32 %s17, %s16
        %p158 = scmp.lt.s32.totalorder %s157, 0
        %s159 = scalar_select %p158, %s157, 0
        %s160 = smul.addr %s159, 4
        %s161 = scalar_lea.vmem %s0, %s160
        %s162 = smul.u32 %s17, %s16
      $region28: #{tpu_custom_call.1} parent=23 // pred_fallthru
        _
    $region24: #{tpu_custom_call.1} parent=5 // pred_fallthru
      _
    %p163 = scmp.le.s32.totalorder 1, %s9
    %p164 = scmp.lt.s32.totalorder %s9, 3
    %p165 = pnand %p163, %p164
    %p166 = pneg %p165
    // Predicated region
    $region29: #{tpu_custom_call.1} parent=5 // pred_check
      _
    $region30: #{tpu_custom_call.1} parent=5 // pred_check_branch
      %168 = sbr.rel (%p165) target = $region32
    $region31: #{tpu_custom_call.1} parent=5 // pred_region
      %s169 = ssub.s32 %s9, 1
      %s170 = smul.u32 %s19, %s18
      %p171 = scmp.lt.s32.totalorder %s170, 0
      %s172 = scalar_select %p171, %s170, 0
      %s173 = smul.addr %s172, 4
      %s174 = scalar_lea.vmem %s0, %s173
      %p175 = pneg %p49
      %p176 = pneg %p46
      %p177 = scmp.lt.s32.totalorder %s19, 0
      %s178 = scalar_select %p177, %s19, 0
      %s179 = scalar_lea.vmem %s1, %s178
      %p180 = pneg %p75
      %p181 = pneg %p72
      %p182 = scmp.lt.s32.totalorder %s19, 0
      %s183 = scalar_select %p182, %s19, 0
      %s184 = smul.addr %s183, 8
      %s185 = scalar_lea.vmem %s2, %s184
      %p186 = pneg %p101
      %p187 = pneg %p98
      %p188 = pneg %p122
      %p189 = pneg %p119
      %s190 = smul.u32 %s19, %s18
      %p191 = scmp.lt.s32.totalorder %s190, 0
      %s192 = scalar_select %p191, %s190, 0
      %s193 = smul.addr %s192, 4
      %s194 = scalar_lea.vmem %s0, %s193
      %s195 = smul.u32 %s19, %s18
      %p196 = scmp.lt.s32.totalorder %s19, 0
      %s197 = scalar_select %p196, %s19, 0
      %s198 = scalar_lea.vmem %s1, %s197
      %p199 = scmp.lt.s32.totalorder %s19, 0
      %s200 = scalar_select %p199, %s19, 0
      %s201 = smul.addr %s200, 8
      %s202 = scalar_lea.vmem %s2, %s201
      %v203 = vld [vmem:[%s198] sm:$0x1]
      %v204 = vunpack.c.0.s8 %v203
      %vm205 = vcmp.eq.s32.totalorder %v204, 1
      %vm206 = vcmp.eq.s32.totalorder %v204, 2
      %vm207 = vcmp.eq.s32.totalorder %v204, 3
      %v208 = vsel %vm205, 1, 0
      %v209 = vsel %vm206, 1, 0
      %v210 = vsel %vm207, 1, 0
      %v211 = vcvt.s32.f32 %v208
      %v212 = vcvt.s32.f32 %v209
      %v213 = vcvt.s32.f32 %v210
      %vm214 = vcmask 1041408
      %v215 = vsel %vm214, %v211, 0.0
      %v216 = vrot.slane %v215, 4
      %v217 = vadd.f32 %v215, %v216
      %v218 = vrot.slane %v217, 2
      %v219 = vadd.f32 %v217, %v218
      %v220 = vrot.slane %v219, 1
      %v221 = vadd.f32 %v219, %v220
      %v222 = vsel %vm214, %v212, 0.0
      %v223 = vrot.slane %v222, 4
      %v224 = vadd.f32 %v222, %v223
      %v225 = vrot.slane %v224, 2
      %v226 = vadd.f32 %v224, %v225
      %v227 = vrot.slane %v226, 1
      %v228 = vadd.f32 %v226, %v227
      %v229 = vsel %vm214, %v213, 0.0
      %v230 = vrot.slane %v229, 4
      %v231 = vadd.f32 %v229, %v230
      %v232 = vrot.slane %v231, 2
      %v233 = vadd.f32 %v231, %v232
      %v234 = vrot.slane %v233, 1
      %v235 = vadd.f32 %v233, %v234
      %p236 = scmp.eq.s32.totalorder %s18, 0
      %p237 = scmp.eq.s32.totalorder %s19, 0
      %p238 = pnand %p236, %p237
      %p239 = pneg %p238
      // Predicated region
      $region33: #{tpu_custom_call.1} parent=31 // pred_check
        _
      $region34: #{tpu_custom_call.1} parent=31 // pred_check_branch
        %241 = sbr.rel (%p238) target = $region36
      $region35: #{tpu_custom_call.1} parent=31 // pred_region
        %vm242 = vcmask 59392
        %243 = vst.msk [vmem:[#allocation2] sm:$0x7] %vm242, 0.0
        %244 = vst.msk [vmem:[#allocation2 + $0x4] sm:$0x7] %vm242, 0.0
        %vm245 = vcmask 2048
        %246 = vst.msk [vmem:[#allocation3] sm:$0x7] %vm245, 0.0
        %247 = vst [vmem:[#allocation5] sm:$0x1] 0.0
      $region36: #{tpu_custom_call.1} parent=31 // pred_fallthru
        _
      // Predicated region
      $region37: #{tpu_custom_call.1} parent=31 // pred_check
        %p248 = pneg %p236
      $region38: #{tpu_custom_call.1} parent=31 // pred_check_branch
        %250 = sbr.rel (%p248) target = $region40
      $region39: #{tpu_custom_call.1} parent=31 // pred_region
        %v251 = vld [vmem:[#allocation3] sm:$0x7]
        %vm255 = vcmask 1041409
        %v256 = vsel %vm255, %v228, %v221
        %vm257 = vcmask 1042434
        %v258 = vsel %vm257, %v235, %v256
        %vm260 = vcmask 1042432
        %v261 = vsel %vm260, %v258, 0.0
        %262 = vadd.xlane.f32.xlu0 %v261
        %v263 = vpop.xlane.xlu0 %262
        %v264 = vadd.f32 %v251, %v263
        %vm265 = vcmask 2048
        %266 = vst.msk [vmem:[#allocation3] sm:$0x7] %vm265, %v264
        %v267 = vld [vmem:[#allocation2] sm:$0x7]
        %v268 = vld [vmem:[%s202] sm:$0xff]
        %269 = vmatprep.subr.mxu0 0.0
        %270 = vmatpush1.xpose.msra.mxu0 0.0
        %271 = vmatprep.subr.mxu0 0.0
        %272 = vmatpush1.xpose.msra.mxu0 0.0
        %273 = vmatprep.subr.mxu0 0.0
        %274 = vmatpush1.xpose.msra.mxu0 0.0
        %275 = vmatprep.subr.mxu0 0.0
        %276 = vmatpush1.xpose.msra.mxu0 0.0
        %277 = vmatprep.subr.mxu0 0.0
        %278 = vmatpush1.xpose.msra.mxu0 0.0
        %279 = vmatprep.subr.mxu0 0.0
        %280 = vmatpush1.xpose.msra.mxu0 0.0
        %281 = vmatprep.subr.mxu0 0.0
        %282 = vmatpush1.xpose.msra.mxu0 0.0
        %283 = vmatprep.subr.mxu0 0.0
        %284 = vmatpush1.xpose.msra.mxu0 0.0
        %285 = vmatprep.subr.mxu0 0.0
        %286 = vmatpush1.xpose.msra.mxu0 0.0
        %287 = vmatprep.subr.mxu0 0.0
        %288 = vmatpush1.xpose.msra.mxu0 0.0
        %289 = vmatprep.subr.mxu0 0.0
        %290 = vmatpush1.xpose.msra.mxu0 0.0
        %291 = vmatprep.subr.mxu0 0.0
        %292 = vmatpush1.xpose.msra.mxu0 0.0
        %293 = vmatprep.subr.mxu0 0.0
        %294 = vmatpush1.xpose.msra.mxu0 0.0
        %295 = vmatprep.subr.mxu0 0.0
        %296 = vmatpush1.xpose.msra.mxu0 0.0
        %297 = vmatprep.subr.mxu0 0.0
        %298 = vmatpush1.xpose.msra.mxu0 0.0
        %299 = vmatprep.subr.mxu0 0.0
        %300 = vmatpush1.xpose.msra.mxu0 %v268
        %301 = vmatprep.subr.mxu0 0.0
        %302 = vmatpush2.xpose.msra.mxu0 0.0
        %303 = vmatprep.subr.mxu0 0.0
        %304 = vmatpush2.xpose.msra.mxu0 0.0
        %305 = vmatprep.subr.mxu0 0.0
        %306 = vmatpush2.xpose.msra.mxu0 0.0
        %307 = vmatprep.subr.mxu0 0.0
        %308 = vmatpush2.xpose.msra.mxu0 0.0
        %309 = vmatprep.subr.mxu0 0.0
        %310 = vmatpush2.xpose.msra.mxu0 0.0
        %311 = vmatprep.subr.mxu0 0.0
        %312 = vmatpush2.xpose.msra.mxu0 0.0
        %313 = vmatprep.subr.mxu0 0.0
        %314 = vmatpush2.xpose.msra.mxu0 0.0
        %315 = vmatprep.subr.mxu0 0.0
        %316 = vmatpush2.xpose.msra.mxu0 0.0
        %317 = vmatprep.subr.mxu0 0.0
        %318 = vmatpush2.xpose.msra.mxu0 0.0
        %319 = vmatprep.subr.mxu0 0.0
        %320 = vmatpush2.xpose.msra.mxu0 0.0
        %321 = vmatprep.subr.mxu0 0.0
        %322 = vmatpush2.xpose.msra.mxu0 0.0
        %323 = vmatprep.subr.mxu0 0.0
        %324 = vmatpush2.xpose.msra.mxu0 0.0
        %325 = vmatprep.subr.mxu0 0.0
        %326 = vmatpush2.xpose.msra.mxu0 0.0
        %327 = vmatprep.subr.mxu0 0.0
        %328 = vmatpush2.xpose.msra.mxu0 0.0
        %329 = vmatprep.subr.mxu0 0.0
        %330 = vmatpush2.xpose.msra.mxu0 0.0
        %331 = vmatprep.subr.mxu0 0.0
        %332 = vmatpush2.xpose.msra.mxu0 0.0
        %333 = vmatprep.mubr.f32.mxu0 0.0
        %334 = vmatmul.mubr.f32.gmra.mxu0 %v258
        %v335 = vpop.f32.mrf.mxu0
        %v336 = vadd.f32 0.0, %v335
        %v337 = vpop.f32.mrf.mxu0
        %338 = vdwg.mxu0
        %v339 = vadd.f32 %v267, %v336
        %vm340 = vcmask 59392
        %341 = vst.msk [vmem:[#allocation2] sm:$0x7] %vm340, %v339
        %s342 = scalar_lea.vmem [#allocation2], 4
        %v343 = vld [vmem:[%s342] sm:$0x7]
        %s344 = scalar_lea.vmem %s202, 8
        %v345 = vld [vmem:[%s344] sm:$0xff]
        %346 = vmatprep.subr.mxu0 0.0
        %347 = vmatpush1.xpose.msra.mxu0 0.0
        %348 = vmatprep.subr.mxu0 0.0
        %349 = vmatpush1.xpose.msra.mxu0 0.0
        %350 = vmatprep.subr.mxu0 0.0
        %351 = vmatpush1.xpose.msra.mxu0 0.0
        %352 = vmatprep.subr.mxu0 0.0
        %353 = vmatpush1.xpose.msra.mxu0 0.0
        %354 = vmatprep.subr.mxu0 0.0
        %355 = vmatpush1.xpose.msra.mxu0 0.0
        %356 = vmatprep.subr.mxu0 0.0
        %357 = vmatpush1.xpose.msra.mxu0 0.0
        %358 = vmatprep.subr.mxu0 0.0
        %359 = vmatpush1.xpose.msra.mxu0 0.0
        %360 = vmatprep.subr.mxu0 0.0
        %361 = vmatpush1.xpose.msra.mxu0 0.0
        %362 = vmatprep.subr.mxu0 0.0
        %363 = vmatpush1.xpose.msra.mxu0 0.0
        %364 = vmatprep.subr.mxu0 0.0
        %365 = vmatpush1.xpose.msra.mxu0 0.0
        %366 = vmatprep.subr.mxu0 0.0
        %367 = vmatpush1.xpose.msra.mxu0 0.0
        %368 = vmatprep.subr.mxu0 0.0
        %369 = vmatpush1.xpose.msra.mxu0 0.0
        %370 = vmatprep.subr.mxu0 0.0
        %371 = vmatpush1.xpose.msra.mxu0 0.0
        %372 = vmatprep.subr.mxu0 0.0
        %373 = vmatpush1.xpose.msra.mxu0 0.0
        %374 = vmatprep.subr.mxu0 0.0
        %375 = vmatpush1.xpose.msra.mxu0 0.0
        %376 = vmatprep.subr.mxu0 0.0
        %377 = vmatpush1.xpose.msra.mxu0 %v345
        %378 = vmatprep.subr.mxu0 0.0
        %379 = vmatpush2.xpose.msra.mxu0 0.0
        %380 = vmatprep.subr.mxu0 0.0
        %381 = vmatpush2.xpose.msra.mxu0 0.0
        %382 = vmatprep.subr.mxu0 0.0
        %383 = vmatpush2.xpose.msra.mxu0 0.0
        %384 = vmatprep.subr.mxu0 0.0
        %385 = vmatpush2.xpose.msra.mxu0 0.0
        %386 = vmatprep.subr.mxu0 0.0
        %387 = vmatpush2.xpose.msra.mxu0 0.0
        %388 = vmatprep.subr.mxu0 0.0
        %389 = vmatpush2.xpose.msra.mxu0 0.0
        %390 = vmatprep.subr.mxu0 0.0
        %391 = vmatpush2.xpose.msra.mxu0 0.0
        %392 = vmatprep.subr.mxu0 0.0
        %393 = vmatpush2.xpose.msra.mxu0 0.0
        %394 = vmatprep.subr.mxu0 0.0
        %395 = vmatpush2.xpose.msra.mxu0 0.0
        %396 = vmatprep.subr.mxu0 0.0
        %397 = vmatpush2.xpose.msra.mxu0 0.0
        %398 = vmatprep.subr.mxu0 0.0
        %399 = vmatpush2.xpose.msra.mxu0 0.0
        %400 = vmatprep.subr.mxu0 0.0
        %401 = vmatpush2.xpose.msra.mxu0 0.0
        %402 = vmatprep.subr.mxu0 0.0
        %403 = vmatpush2.xpose.msra.mxu0 0.0
        %404 = vmatprep.subr.mxu0 0.0
        %405 = vmatpush2.xpose.msra.mxu0 0.0
        %406 = vmatprep.subr.mxu0 0.0
        %407 = vmatpush2.xpose.msra.mxu0 0.0
        %408 = vmatprep.subr.mxu0 0.0
        %409 = vmatpush2.xpose.msra.mxu0 0.0
        %410 = vmatprep.mubr.f32.mxu0 0.0
        %411 = vmatmul.mubr.f32.gmra.mxu0 %v258
        %v412 = vpop.f32.mrf.mxu0
        %v413 = vadd.f32 0.0, %v412
        %v414 = vpop.f32.mrf.mxu0
        %415 = vdwg.mxu0
        %v416 = vadd.f32 %v343, %v413
        %417 = vst.msk [vmem:[%s342] sm:$0x7] %vm340, %v416
      $region40: #{tpu_custom_call.1} parent=31 // pred_fallthru
        _
      %p418 = scmp.eq.s32.totalorder %s18, 1
      %p419 = pnand %p418, %p237
      %p420 = pneg %p419
      // Predicated region
      $region41: #{tpu_custom_call.1} parent=31 // pred_check
        _
      $region42: #{tpu_custom_call.1} parent=31 // pred_check_branch
        %422 = sbr.rel (%p419) target = $region44
      $region43: #{tpu_custom_call.1} parent=31 // pred_region
        %v423 = vld [vmem:[#allocation3] sm:$0x7]
        %v424 = vmax.f32 %v423, 1.0
        %v425 = vrcp.pop %v424
        %v426 = vmul.f32 1.0, %v425
        %v427 = vld [vmem:[#allocation2] sm:$0x7]
        %v428 = vld [vmem:[#allocation2 + $0x4] sm:$0x7]
        %430 = vset.pattern.permute.xlu0 0
        %431 = vperm.xlu0 %430, %v426
        %v432 = vpop.permute.xlu0 %431
        %v434 = vmul.f32 %v427, %v432
        %v435 = vmul.f32 %v428, %v432
        %vm436 = vcmask 59392
        %437 = vst.msk [vmem:[#allocation4] sm:$0x7] %vm436, %v434
        %438 = vst.msk [vmem:[#allocation4 + $0x4] sm:$0x7] %vm436, %v435
      $region44: #{tpu_custom_call.1} parent=31 // pred_fallthru
        _
      // Predicated region
      $region45: #{tpu_custom_call.1} parent=31 // pred_check
        %p439 = pneg %p418
      $region46: #{tpu_custom_call.1} parent=31 // pred_check_branch
        %441 = sbr.rel (%p439) target = $region48
      $region47: #{tpu_custom_call.1} parent=31 // pred_region
        %v442 = vld [vmem:[#allocation3] sm:$0x7]
        %v443 = vmax.f32 %v442, 1.0
        %v444 = vrcp.pop %v443
        %v445 = vmul.f32 1.0, %v444
        %447 = vset.pattern.permute.xlu0 0
        %448 = vperm.xlu0 %447, %v445
        %v449 = vpop.permute.xlu0 %448
        %v450 = vrot.slane %v449, 1
        %v451 = vrot.slane %v449, 2
        %v455 = vmul.f32 %v221, %v449
        %v456 = vmul.f32 %v228, %v450
        %v457 = vmul.f32 %v235, %v451
        %v458 = vld [vmem:[%s202] sm:$0xff]
        %v459 = vmul.f32 %v458, %v458
        %v460 = vrot.slane %v459, 4
        %v461 = vadd.f32 %v459, %v460
        %v462 = vrot.slane %v461, 2
        %v463 = vadd.f32 %v461, %v462
        %v464 = vrot.slane %v463, 1
        %v465 = vadd.f32 %v463, %v464
        %v466 = vld [vmem:[%s194] sm:$0x7]
        %v467 = vmul.f32 %v466, %v466
        %vm468 = vcmask 1042432
        %v469 = vsel %vm468, %v467, 0.0
        %v470 = vrot.slane %v469, 4
        %v471 = vadd.f32 %v469, %v470
        %v472 = vrot.slane %v471, 2
        %v473 = vadd.f32 %v471, %v472
        %v474 = vrot.slane %v473, 1
        %v475 = vadd.f32 %v473, %v474
        %v476 = vrsqrt.pop %v475
        %v477 = vmul.f32 %v475, %v476
        %vm478 = vcmp.eq.f32.partialorder %v475, inf
        %v479 = vsel %vm478, %v475, %v477
        %vm480 = vcmp.eq.f32.partialorder %v475, 0.0
        %v481 = vand.u32 %v475, 2147483648
        %v482 = vsel %vm480, %v481, %v479
        %v483 = vxor.u32 %v482, 2147483648
        %v484 = vmul.f32 %v483, 1.442695
        %v485 = vpow.pop %v484
        %v486 = vadd.f32 %v485, 1.0
        %v487 = vrcp.pop %v486
        %v488 = vmul.f32 1.0, %v487
        %v489 = vld [vmem:[#allocation4] sm:$0x7]
        %v490 = vmul.f32 %v489, %v489
        %vm491 = vcmask 59392
        %v492 = vsel %vm491, %v490, 0.0
        %493 = vadd.xlane.f32.xlu0 %v492
        %v494 = vpop.xlane.xlu0 %493
        %vm495 = vcmask 64512
        %v497 = vsel %vm495, %v489, 0
        %499 = vmatprep.subr.mxu0 0.0
        %500 = vmatpush1.msra.mxu0 0.0
        %501 = vmatprep.subr.mxu0 0.0
        %502 = vmatpush1.msra.mxu0 0.0
        %503 = vmatprep.subr.mxu0 0.0
        %504 = vmatpush1.msra.mxu0 0.0
        %505 = vmatprep.subr.mxu0 0.0
        %506 = vmatpush1.msra.mxu0 0.0
        %507 = vmatprep.subr.mxu0 0.0
        %508 = vmatpush1.msra.mxu0 0.0
        %509 = vmatprep.subr.mxu0 0.0
        %510 = vmatpush1.msra.mxu0 0.0
        %511 = vmatprep.subr.mxu0 0.0
        %512 = vmatpush1.msra.mxu0 0.0
        %513 = vmatprep.subr.mxu0 0.0
        %514 = vmatpush1.msra.mxu0 0.0
        %515 = vmatprep.subr.mxu0 0.0
        %516 = vmatpush1.msra.mxu0 0.0
        %517 = vmatprep.subr.mxu0 0.0
        %518 = vmatpush1.msra.mxu0 0.0
        %519 = vmatprep.subr.mxu0 0.0
        %520 = vmatpush1.msra.mxu0 0.0
        %521 = vmatprep.subr.mxu0 0.0
        %522 = vmatpush1.msra.mxu0 0.0
        %523 = vmatprep.subr.mxu0 0.0
        %524 = vmatpush1.msra.mxu0 0.0
        %525 = vmatprep.subr.mxu0 0.0
        %526 = vmatpush1.msra.mxu0 0.0
        %527 = vmatprep.subr.mxu0 0.0
        %528 = vmatpush1.msra.mxu0 0.0
        %529 = vmatprep.subr.mxu0 0.0
        %530 = vmatpush1.msra.mxu0 %v458
        %531 = vmatprep.subr.mxu0 0.0
        %532 = vmatpush2.msra.mxu0 0.0
        %533 = vmatprep.subr.mxu0 0.0
        %534 = vmatpush2.msra.mxu0 0.0
        %535 = vmatprep.subr.mxu0 0.0
        %536 = vmatpush2.msra.mxu0 0.0
        %537 = vmatprep.subr.mxu0 0.0
        %538 = vmatpush2.msra.mxu0 0.0
        %539 = vmatprep.subr.mxu0 0.0
        %540 = vmatpush2.msra.mxu0 0.0
        %541 = vmatprep.subr.mxu0 0.0
        %542 = vmatpush2.msra.mxu0 0.0
        %543 = vmatprep.subr.mxu0 0.0
        %544 = vmatpush2.msra.mxu0 0.0
        %545 = vmatprep.subr.mxu0 0.0
        %546 = vmatpush2.msra.mxu0 0.0
        %547 = vmatprep.subr.mxu0 0.0
        %548 = vmatpush2.msra.mxu0 0.0
        %549 = vmatprep.subr.mxu0 0.0
        %550 = vmatpush2.msra.mxu0 0.0
        %551 = vmatprep.subr.mxu0 0.0
        %552 = vmatpush2.msra.mxu0 0.0
        %553 = vmatprep.subr.mxu0 0.0
        %554 = vmatpush2.msra.mxu0 0.0
        %555 = vmatprep.subr.mxu0 0.0
        %556 = vmatpush2.msra.mxu0 0.0
        %557 = vmatprep.subr.mxu0 0.0
        %558 = vmatpush2.msra.mxu0 0.0
        %559 = vmatprep.subr.mxu0 0.0
        %560 = vmatpush2.msra.mxu0 0.0
        %561 = vmatprep.subr.mxu0 0.0
        %562 = vmatpush2.msra.mxu0 0.0
        %563 = vmatprep.mubr.f32.mxu0 0.0
        %564 = vmatmul.mubr.f32.gmra.mxu0 %v497
        %v565 = vpop.f32.mrf.mxu0
        %v566 = vadd.f32 0.0, %v565
        %v567 = vpop.f32.mrf.mxu0
        %568 = vdwg.mxu0
        %v569 = vadd.f32 %v465, %v494
        %v570 = vmul.f32 %v566, 2.0
        %v571 = vsub.f32 %v569, %v570
        %v572 = vmax.f32 %v571, 0.0
        %v573 = vrsqrt.pop %v572
        %v574 = vmul.f32 %v572, %v573
        %vm575 = vcmp.eq.f32.partialorder %v572, inf
        %v576 = vsel %vm575, %v572, %v574
        %vm577 = vcmp.eq.f32.partialorder %v572, 0.0
        %v578 = vand.u32 %v572, 2147483648
        %v579 = vsel %vm577, %v578, %v576
        %v580 = vsub.f32 %v579, 0.7
        %v581 = vmax.f32 %v580, 0.0
        %v582 = vmul.f32 %v455, %v488
        %v583 = vmul.f32 %v456, %v488
        %v584 = vmul.f32 %v457, %v488
        %v585 = vmul.f32 %v581, %v581
        %v587 = vrot.slane %v585, 1
        %v588 = vrot.slane %v585, 2
        %v592 = vmul.f32 %v582, %v585
        %v593 = vmul.f32 %v583, %v587
        %v594 = vmul.f32 %v584, %v588
        %v598 = vrot.slane %v593, 7
        %vm599 = vcmask 1041409
        %v600 = vsel %vm599, %v598, %v592
        %v601 = vrot.slane %v594, 6
        %vm602 = vcmask 1042434
        %v603 = vsel %vm602, %v601, %v600
        %v605 = vsel %vm468, %v603, 0.0
        %v606 = vrot.slane %v605, 4
        %v607 = vadd.f32 %v605, %v606
        %v608 = vrot.slane %v607, 2
        %v609 = vadd.f32 %v607, %v608
        %v610 = vrot.slane %v609, 1
        %v611 = vadd.f32 %v609, %v610
        %v612 = vadd.f32 %v611, 0.0
        %s613 = scalar_lea.vmem %s202, 8
        %v614 = vld [vmem:[%s613] sm:$0xff]
        %v615 = vmul.f32 %v614, %v614
        %v616 = vrot.slane %v615, 4
        %v617 = vadd.f32 %v615, %v616
        %v618 = vrot.slane %v617, 2
        %v619 = vadd.f32 %v617, %v618
        %v620 = vrot.slane %v619, 1
        %v621 = vadd.f32 %v619, %v620
        %s622 = scalar_lea.vmem %s194, 4
        %v623 = vld [vmem:[%s622] sm:$0x7]
        %v624 = vmul.f32 %v623, %v623
        %v625 = vsel %vm468, %v624, 0.0
        %v626 = vrot.slane %v625, 4
        %v627 = vadd.f32 %v625, %v626
        %v628 = vrot.slane %v627, 2
        %v629 = vadd.f32 %v627, %v628
        %v630 = vrot.slane %v629, 1
        %v631 = vadd.f32 %v629, %v630
        %v632 = vrsqrt.pop %v631
        %v633 = vmul.f32 %v631, %v632
        %vm634 = vcmp.eq.f32.partialorder %v631, inf
        %v635 = vsel %vm634, %v631, %v633
        %vm636 = vcmp.eq.f32.partialorder %v631, 0.0
        %v637 = vand.u32 %v631, 2147483648
        %v638 = vsel %vm636, %v637, %v635
        %v639 = vxor.u32 %v638, 2147483648
        %v640 = vmul.f32 %v639, 1.442695
        %v641 = vpow.pop %v640
        %v642 = vadd.f32 %v641, 1.0
        %v643 = vrcp.pop %v642
        %v644 = vmul.f32 1.0, %v643
        %s645 = scalar_lea.vmem [#allocation4], 4
        %v646 = vld [vmem:[%s645] sm:$0x7]
        %v647 = vmul.f32 %v646, %v646
        %v648 = vsel %vm491, %v647, 0.0
        %649 = vadd.xlane.f32.xlu0 %v648
        %v650 = vpop.xlane.xlu0 %649
        %v652 = vsel %vm495, %v646, 0
        %654 = vmatprep.subr.mxu0 0.0
        %655 = vmatpush1.msra.mxu0 0.0
        %656 = vmatprep.subr.mxu0 0.0
        %657 = vmatpush1.msra.mxu0 0.0
        %658 = vmatprep.subr.mxu0 0.0
        %659 = vmatpush1.msra.mxu0 0.0
        %660 = vmatprep.subr.mxu0 0.0
        %661 = vmatpush1.msra.mxu0 0.0
        %662 = vmatprep.subr.mxu0 0.0
        %663 = vmatpush1.msra.mxu0 0.0
        %664 = vmatprep.subr.mxu0 0.0
        %665 = vmatpush1.msra.mxu0 0.0
        %666 = vmatprep.subr.mxu0 0.0
        %667 = vmatpush1.msra.mxu0 0.0
        %668 = vmatprep.subr.mxu0 0.0
        %669 = vmatpush1.msra.mxu0 0.0
        %670 = vmatprep.subr.mxu0 0.0
        %671 = vmatpush1.msra.mxu0 0.0
        %672 = vmatprep.subr.mxu0 0.0
        %673 = vmatpush1.msra.mxu0 0.0
        %674 = vmatprep.subr.mxu0 0.0
        %675 = vmatpush1.msra.mxu0 0.0
        %676 = vmatprep.subr.mxu0 0.0
        %677 = vmatpush1.msra.mxu0 0.0
        %678 = vmatprep.subr.mxu0 0.0
        %679 = vmatpush1.msra.mxu0 0.0
        %680 = vmatprep.subr.mxu0 0.0
        %681 = vmatpush1.msra.mxu0 0.0
        %682 = vmatprep.subr.mxu0 0.0
        %683 = vmatpush1.msra.mxu0 0.0
        %684 = vmatprep.subr.mxu0 0.0
        %685 = vmatpush1.msra.mxu0 %v614
        %686 = vmatprep.subr.mxu0 0.0
        %687 = vmatpush2.msra.mxu0 0.0
        %688 = vmatprep.subr.mxu0 0.0
        %689 = vmatpush2.msra.mxu0 0.0
        %690 = vmatprep.subr.mxu0 0.0
        %691 = vmatpush2.msra.mxu0 0.0
        %692 = vmatprep.subr.mxu0 0.0
        %693 = vmatpush2.msra.mxu0 0.0
        %694 = vmatprep.subr.mxu0 0.0
        %695 = vmatpush2.msra.mxu0 0.0
        %696 = vmatprep.subr.mxu0 0.0
        %697 = vmatpush2.msra.mxu0 0.0
        %698 = vmatprep.subr.mxu0 0.0
        %699 = vmatpush2.msra.mxu0 0.0
        %700 = vmatprep.subr.mxu0 0.0
        %701 = vmatpush2.msra.mxu0 0.0
        %702 = vmatprep.subr.mxu0 0.0
        %703 = vmatpush2.msra.mxu0 0.0
        %704 = vmatprep.subr.mxu0 0.0
        %705 = vmatpush2.msra.mxu0 0.0
        %706 = vmatprep.subr.mxu0 0.0
        %707 = vmatpush2.msra.mxu0 0.0
        %708 = vmatprep.subr.mxu0 0.0
        %709 = vmatpush2.msra.mxu0 0.0
        %710 = vmatprep.subr.mxu0 0.0
        %711 = vmatpush2.msra.mxu0 0.0
        %712 = vmatprep.subr.mxu0 0.0
        %713 = vmatpush2.msra.mxu0 0.0
        %714 = vmatprep.subr.mxu0 0.0
        %715 = vmatpush2.msra.mxu0 0.0
        %716 = vmatprep.subr.mxu0 0.0
        %717 = vmatpush2.msra.mxu0 0.0
        %718 = vmatprep.mubr.f32.mxu0 0.0
        %719 = vmatmul.mubr.f32.gmra.mxu0 %v652
        %v720 = vpop.f32.mrf.mxu0
        %v721 = vadd.f32 0.0, %v720
        %v722 = vpop.f32.mrf.mxu0
        %723 = vdwg.mxu0
        %v724 = vadd.f32 %v621, %v650
        %v725 = vmul.f32 %v721, 2.0
        %v726 = vsub.f32 %v724, %v725
        %v727 = vmax.f32 %v726, 0.0
        %v728 = vrsqrt.pop %v727
        %v729 = vmul.f32 %v727, %v728
        %vm730 = vcmp.eq.f32.partialorder %v727, inf
        %v731 = vsel %vm730, %v727, %v729
        %vm732 = vcmp.eq.f32.partialorder %v727, 0.0
        %v733 = vand.u32 %v727, 2147483648
        %v734 = vsel %vm732, %v733, %v731
        %v735 = vsub.f32 %v734, 0.7
        %v736 = vmax.f32 %v735, 0.0
        %v737 = vmul.f32 %v455, %v644
        %v738 = vmul.f32 %v456, %v644
        %v739 = vmul.f32 %v457, %v644
        %v740 = vmul.f32 %v736, %v736
        %v742 = vrot.slane %v740, 1
        %v743 = vrot.slane %v740, 2
        %v747 = vmul.f32 %v737, %v740
        %v748 = vmul.f32 %v738, %v742
        %v749 = vmul.f32 %v739, %v743
        %v753 = vrot.slane %v748, 7
        %v754 = vsel %vm599, %v753, %v747
        %v755 = vrot.slane %v749, 6
        %v756 = vsel %vm602, %v755, %v754
        %v758 = vsel %vm468, %v756, 0.0
        %v759 = vrot.slane %v758, 4
        %v760 = vadd.f32 %v758, %v759
        %v761 = vrot.slane %v760, 2
        %v762 = vadd.f32 %v760, %v761
        %v763 = vrot.slane %v762, 1
        %v764 = vadd.f32 %v762, %v763
        %v765 = vadd.f32 %v612, %v764
        %v766 = vld [vmem:[#allocation5] sm:$0x1]
        %v767 = vadd.f32 %v766, %v765
        %768 = vst [vmem:[#allocation5] sm:$0x1] %v767
      $region48: #{tpu_custom_call.1} parent=31 // pred_fallthru
        _
      // Predicated region
      $region49: #{tpu_custom_call.1} parent=31 // pred_check
        _
      $region50: #{tpu_custom_call.1} parent=31 // pred_check_branch
        %770 = sbr.rel (%p419) target = $region52
      $region51: #{tpu_custom_call.1} parent=31 // pred_region
        %v771 = vld [vmem:[#allocation4] sm:$0x7]
        %v772 = vld [vmem:[#allocation4 + $0x4] sm:$0x7]
        %v773 = vmul.f32 %v771, %v771
        %v774 = vmul.f32 %v772, %v772
        %vm775 = vcmask 59392
        %v776 = vsel %vm775, %v773, 0.0
        %777 = vadd.xlane.f32.xlu0 %v776
        %v778 = vpop.xlane.xlu0 %777
        %v779 = vsel %vm775, %v774, 0.0
        %780 = vadd.xlane.f32.xlu0 %v779
        %v781 = vpop.xlane.xlu0 %780
        %vm782 = vcmask 64512
        %v784 = vsel %vm782, %v771, 0
        %786 = vmatprep.subr.mxu0 0.0
        %787 = vmatpush1.xpose.msra.mxu0 0.0
        %788 = vmatprep.subr.mxu0 0.0
        %789 = vmatpush1.xpose.msra.mxu0 0.0
        %790 = vmatprep.subr.mxu0 0.0
        %791 = vmatpush1.xpose.msra.mxu0 0.0
        %792 = vmatprep.subr.mxu0 0.0
        %793 = vmatpush1.xpose.msra.mxu0 0.0
        %794 = vmatprep.subr.mxu0 0.0
        %795 = vmatpush1.xpose.msra.mxu0 0.0
        %796 = vmatprep.subr.mxu0 0.0
        %797 = vmatpush1.xpose.msra.mxu0 0.0
        %798 = vmatprep.subr.mxu0 0.0
        %799 = vmatpush1.xpose.msra.mxu0 0.0
        %800 = vmatprep.subr.mxu0 0.0
        %801 = vmatpush1.xpose.msra.mxu0 0.0
        %802 = vmatprep.subr.mxu0 0.0
        %803 = vmatpush1.xpose.msra.mxu0 0.0
        %804 = vmatprep.subr.mxu0 0.0
        %805 = vmatpush1.xpose.msra.mxu0 0.0
        %806 = vmatprep.subr.mxu0 0.0
        %807 = vmatpush1.xpose.msra.mxu0 0.0
        %808 = vmatprep.subr.mxu0 0.0
        %809 = vmatpush1.xpose.msra.mxu0 0.0
        %810 = vmatprep.subr.mxu0 0.0
        %811 = vmatpush1.xpose.msra.mxu0 0.0
        %812 = vmatprep.subr.mxu0 0.0
        %813 = vmatpush1.xpose.msra.mxu0 0.0
        %814 = vmatprep.subr.mxu0 0.0
        %815 = vmatpush1.xpose.msra.mxu0 0.0
        %816 = vmatprep.subr.mxu0 0.0
        %817 = vmatpush1.xpose.msra.mxu0 %v784
        %818 = vmatprep.subr.mxu0 0.0
        %819 = vmatpush2.xpose.msra.mxu0 0.0
        %820 = vmatprep.subr.mxu0 0.0
        %821 = vmatpush2.xpose.msra.mxu0 0.0
        %822 = vmatprep.subr.mxu0 0.0
        %823 = vmatpush2.xpose.msra.mxu0 0.0
        %824 = vmatprep.subr.mxu0 0.0
        %825 = vmatpush2.xpose.msra.mxu0 0.0
        %826 = vmatprep.subr.mxu0 0.0
        %827 = vmatpush2.xpose.msra.mxu0 0.0
        %828 = vmatprep.subr.mxu0 0.0
        %829 = vmatpush2.xpose.msra.mxu0 0.0
        %830 = vmatprep.subr.mxu0 0.0
        %831 = vmatpush2.xpose.msra.mxu0 0.0
        %832 = vmatprep.subr.mxu0 0.0
        %833 = vmatpush2.xpose.msra.mxu0 0.0
        %834 = vmatprep.subr.mxu0 0.0
        %835 = vmatpush2.xpose.msra.mxu0 0.0
        %836 = vmatprep.subr.mxu0 0.0
        %837 = vmatpush2.xpose.msra.mxu0 0.0
        %838 = vmatprep.subr.mxu0 0.0
        %839 = vmatpush2.xpose.msra.mxu0 0.0
        %840 = vmatprep.subr.mxu0 0.0
        %841 = vmatpush2.xpose.msra.mxu0 0.0
        %842 = vmatprep.subr.mxu0 0.0
        %843 = vmatpush2.xpose.msra.mxu0 0.0
        %844 = vmatprep.subr.mxu0 0.0
        %845 = vmatpush2.xpose.msra.mxu0 0.0
        %846 = vmatprep.subr.mxu0 0.0
        %847 = vmatpush2.xpose.msra.mxu0 0.0
        %848 = vmatprep.subr.mxu0 0.0
        %849 = vmatpush2.xpose.msra.mxu0 0.0
        %850 = vmatprep.mubr.f32.mxu0 0.0
        %851 = vmatmul.mubr.f32.gmra.mxu0 %v784
        %v852 = vpop.f32.mrf.mxu0
        %v853 = vadd.f32 0.0, %v852
        %v854 = vpop.f32.mrf.mxu0
        %855 = vdwg.mxu0
        %v857 = vsel %vm782, %v772, 0
        %859 = vmatprep.subr.mxu0 0.0
        %860 = vmatpush1.xpose.msra.mxu0 0.0
        %861 = vmatprep.subr.mxu0 0.0
        %862 = vmatpush1.xpose.msra.mxu0 0.0
        %863 = vmatprep.subr.mxu0 0.0
        %864 = vmatpush1.xpose.msra.mxu0 0.0
        %865 = vmatprep.subr.mxu0 0.0
        %866 = vmatpush1.xpose.msra.mxu0 0.0
        %867 = vmatprep.subr.mxu0 0.0
        %868 = vmatpush1.xpose.msra.mxu0 0.0
        %869 = vmatprep.subr.mxu0 0.0
        %870 = vmatpush1.xpose.msra.mxu0 0.0
        %871 = vmatprep.subr.mxu0 0.0
        %872 = vmatpush1.xpose.msra.mxu0 0.0
        %873 = vmatprep.subr.mxu0 0.0
        %874 = vmatpush1.xpose.msra.mxu0 0.0
        %875 = vmatprep.subr.mxu0 0.0
        %876 = vmatpush1.xpose.msra.mxu0 0.0
        %877 = vmatprep.subr.mxu0 0.0
        %878 = vmatpush1.xpose.msra.mxu0 0.0
        %879 = vmatprep.subr.mxu0 0.0
        %880 = vmatpush1.xpose.msra.mxu0 0.0
        %881 = vmatprep.subr.mxu0 0.0
        %882 = vmatpush1.xpose.msra.mxu0 0.0
        %883 = vmatprep.subr.mxu0 0.0
        %884 = vmatpush1.xpose.msra.mxu0 0.0
        %885 = vmatprep.subr.mxu0 0.0
        %886 = vmatpush1.xpose.msra.mxu0 0.0
        %887 = vmatprep.subr.mxu0 0.0
        %888 = vmatpush1.xpose.msra.mxu0 0.0
        %889 = vmatprep.subr.mxu0 0.0
        %890 = vmatpush1.xpose.msra.mxu0 %v857
        %891 = vmatprep.subr.mxu0 0.0
        %892 = vmatpush2.xpose.msra.mxu0 0.0
        %893 = vmatprep.subr.mxu0 0.0
        %894 = vmatpush2.xpose.msra.mxu0 0.0
        %895 = vmatprep.subr.mxu0 0.0
        %896 = vmatpush2.xpose.msra.mxu0 0.0
        %897 = vmatprep.subr.mxu0 0.0
        %898 = vmatpush2.xpose.msra.mxu0 0.0
        %899 = vmatprep.subr.mxu0 0.0
        %900 = vmatpush2.xpose.msra.mxu0 0.0
        %901 = vmatprep.subr.mxu0 0.0
        %902 = vmatpush2.xpose.msra.mxu0 0.0
        %903 = vmatprep.subr.mxu0 0.0
        %904 = vmatpush2.xpose.msra.mxu0 0.0
        %905 = vmatprep.subr.mxu0 0.0
        %906 = vmatpush2.xpose.msra.mxu0 0.0
        %907 = vmatprep.subr.mxu0 0.0
        %908 = vmatpush2.xpose.msra.mxu0 0.0
        %909 = vmatprep.subr.mxu0 0.0
        %910 = vmatpush2.xpose.msra.mxu0 0.0
        %911 = vmatprep.subr.mxu0 0.0
        %912 = vmatpush2.xpose.msra.mxu0 0.0
        %913 = vmatprep.subr.mxu0 0.0
        %914 = vmatpush2.xpose.msra.mxu0 0.0
        %915 = vmatprep.subr.mxu0 0.0
        %916 = vmatpush2.xpose.msra.mxu0 0.0
        %917 = vmatprep.subr.mxu0 0.0
        %918 = vmatpush2.xpose.msra.mxu0 0.0
        %919 = vmatprep.subr.mxu0 0.0
        %920 = vmatpush2.xpose.msra.mxu0 0.0
        %921 = vmatprep.subr.mxu0 0.0
        %922 = vmatpush2.xpose.msra.mxu0 0.0
        %923 = vmatprep.mubr.f32.mxu0 0.0
        %924 = vmatmul.mubr.f32.gmra.mxu0 %v857
        %v925 = vpop.f32.mrf.mxu0
        %v926 = vadd.f32 0.0, %v925
        %v927 = vpop.f32.mrf.mxu0
        %928 = vdwg.mxu0
        %v931 = vlaneseq
        %v932 = vand.u32 %v931, 127
        %v933 = vlaneseq
        %v934 = vshrl.u32 %v933, 7
        %v935 = vsub.s32 %v932, %v934
        %v936 = vrot.slane %v778, %v935
        %v937 = vlaneseq
        %v938 = vshrl.u32 %v937, 7
        %v939 = vsub.s32 %v932, %v938
        %v940 = vrot.slane %v781, %v939
        %vm941 = vcmask 1041409
        %vm942 = vcmask 1042434
        %v943 = vsel %vm942, %v936, %v936
        %v944 = vsel %vm942, %v940, %v940
        %v947 = vadd.f32 %v778, %v943
        %v948 = vadd.f32 %v781, %v944
        %v949 = vmul.f32 %v853, 2.0
        %v950 = vmul.f32 %v926, 2.0
        %v951 = vsub.f32 %v947, %v949
        %v952 = vsub.f32 %v948, %v950
        %v953 = vmax.f32 %v951, 0.0
        %v954 = vmax.f32 %v952, 0.0
        %v955 = vrsqrt.pop %v953
        %v956 = vmul.f32 %v953, %v955
        %vm957 = vcmp.eq.f32.partialorder %v953, inf
        %v958 = vsel %vm957, %v953, %v956
        %vm959 = vcmp.eq.f32.partialorder %v953, 0.0
        %v960 = vand.u32 %v953, 2147483648
        %v961 = vsel %vm959, %v960, %v958
        %v962 = vrsqrt.pop %v954
        %v963 = vmul.f32 %v954, %v962
        %vm964 = vcmp.eq.f32.partialorder %v954, inf
        %v965 = vsel %vm964, %v954, %v963
        %vm966 = vcmp.eq.f32.partialorder %v954, 0.0
        %v967 = vand.u32 %v954, 2147483648
        %v968 = vsel %vm966, %v967, %v965
        %v969 = vsub.f32 1.5, %v961
        %v970 = vsub.f32 1.5, %v968
        %v971 = vmax.f32 %v969, 0.0
        %v972 = vmax.f32 %v970, 0.0
        %v973 = vlaneseq
        %v974 = vshrl.u32 %v973, 7
        %vm975 = vcmp.ne.s32.totalorder %v974, %v932
        %v976 = vsel %vm975, 1, 0
        %v977 = vcvt.s32.f32 %v976
        %v978 = vmul.f32 %v971, %v971
        %v979 = vmul.f32 %v972, %v972
        %v980 = vmul.f32 %v978, %v977
        %v981 = vmul.f32 %v979, %v977
        %vm982 = vcmask 18432
        %v983 = vsel %vm982, %v980, 0.0
        %984 = vadd.xlane.f32.xlu0 %v983
        %v985 = vpop.xlane.xlu0 %984
        %v986 = vsel %vm982, %v981, 0.0
        %987 = vadd.xlane.f32.xlu0 %v986
        %v988 = vpop.xlane.xlu0 %987
        %v991 = vlaneseq
        %v992 = vshrl.u32 %v991, 7
        %v993 = vsub.s32 %v932, %v992
        %v994 = vrot.slane %v985, %v993
        %v995 = vlaneseq
        %v996 = vshrl.u32 %v995, 7
        %v997 = vsub.s32 %v932, %v996
        %v998 = vrot.slane %v988, %v997
        %v999 = vsel %vm941, %v998, %v994
        %vm1001 = vcmask 17408
        %v1002 = vsel %vm1001, %v999, 0.0
        %1003 = vadd.xlane.f32.xlu0 %v1002
        %v1004 = vpop.xlane.xlu0 %1003
        %v1005 = vld [vmem:[#allocation5] sm:$0x1]
        %vm1006 = vcmask 1040384
        %v1007 = vsel %vm1006, %v1005, 0.0
        %1008 = vadd.xlane.f32.xlu0 %v1007
        %v1009 = vpop.xlane.xlu0 %1008
        %v1010 = vrot.slane %v1009, 4
        %v1011 = vadd.f32 %v1009, %v1010
        %v1012 = vrot.slane %v1011, 2
        %v1013 = vadd.f32 %v1011, %v1012
        %v1014 = vrot.slane %v1013, 1
        %v1015 = vadd.f32 %v1013, %v1014
        %s1016 = vtos %v1015
        %s1017 = smul.f32 %s1016, 0.5
        %s1018 = smul.f32 %s1017, 0.25
        %v1019 = vmul.f32 %v1004, 0.083333336
        %v1020 = vstv %s1018
        %v1021 = vadd.f32 %v1020, %v1019
        %vm1022 = vcmask 1024
        %1023 = vst.msk [vmem:[%s3] sm:$0x3] %vm1022, %v1021
      $region52: #{tpu_custom_call.1} parent=31 // pred_fallthru
        _
      // Predicated region
      $region53: #{tpu_custom_call.1} parent=31 // pred_check
        %p1024 = pneg %p119
      $region54: #{tpu_custom_call.1} parent=31 // pred_check_branch
        %1026 = sbr.rel (%p1024) target = $region56
      $region55: #{tpu_custom_call.1} parent=31 // pred_region
        _
      $region56: #{tpu_custom_call.1} parent=31 // pred_fallthru
        _
      // Predicated region
      $region57: #{tpu_custom_call.1} parent=31 // pred_check
        %p1027 = pneg %p119
      $region58: #{tpu_custom_call.1} parent=31 // pred_check_branch
        %1029 = sbr.rel (%p1027) target = $region60
      $region59: #{tpu_custom_call.1} parent=31 // pred_region
        _
      $region60: #{tpu_custom_call.1} parent=31 // pred_fallthru
        _
    $region32: #{tpu_custom_call.1} parent=5 // pred_fallthru
      _
    %p1030 = scmp.le.s32.totalorder 2, %s9
    // Predicated region
    $region61: #{tpu_custom_call.1} parent=5 // pred_check
      %p1031 = pneg %p1030
    $region62: #{tpu_custom_call.1} parent=5 // pred_check_branch
      %1033 = sbr.rel (%p1031) target = $region64
    $region63: #{tpu_custom_call.1} parent=5 // pred_region
      %s1034 = ssub.s32 %s9, 2
    $region64: #{tpu_custom_call.1} parent=5 // pred_fallthru
      _
  $region6: #{tpu_custom_call.1} parent=0 // loop_footer
    %s13 = sadd.s32 1, %s9
  $region7: #{tpu_custom_call.1} parent=0 // loop_footer_branch
    %8 = sbr.rel target = $region3
  $region8: #{tpu_custom_call.1} parent=0 // loop_exit
    _

</llo_original>
